<compile_context>
chip_gen: v7x
topology: tpu7x:2x2x1
jax: 0.10.0
libtpu: 0.0.40
codegen_flags: <defaults>
</compile_context>

<pallas_src>
import functools

import jax
import jax.numpy as jnp
from jax import lax
from jax.experimental import pallas as pl
from jax.experimental.pallas import tpu as pltpu


def bottleneck_kernel(x_ref, s1_ref, b1_ref, w1_ref, s2_ref, b2_ref, w2_ref,
                      o_ref, win_ref):
    # x_ref  : (1, H, W, Cin)     one image per grid step (compute dtype)
    # s1/b1  : (1, Cin)           folded BN1 scale / shift (f32)
    # w1_ref : (Cin, C4)          1x1 conv weight as a matmul (compute dtype)
    # s2/b2  : (1, C4)            folded BN2 scale / shift (f32)
    # w2_ref : (9*C4, G)          3x3 conv weight packed im2col-style (compute dtype)
    # o_ref  : (1, H, W, G)       conv output only (concat with x done outside)
    # win_ref: (H, W, 9*C4) VMEM  im2col window scratch (f32)
    H, W = x_ref.shape[1], x_ref.shape[2]
    Cin = x_ref.shape[3]
    C4 = w1_ref.shape[1]
    G = w2_ref.shape[1]

    # ---- BN1 (folded scale/shift, f32) + ReLU ----
    x = x_ref[0].astype(jnp.float32).reshape(H * W, Cin)
    h = jnp.maximum(x * s1_ref[...] + b1_ref[...], 0.0)

    # ---- 1x1 conv as a channel matmul (low-precision operands, f32 accum) ----
    a1 = jnp.dot(h.astype(w1_ref.dtype), w1_ref[...],
                 preferred_element_type=jnp.float32)            # (H*W, C4)

    # ---- BN2 (folded, f32) + ReLU ----
    y = jnp.maximum(a1 * s2_ref[...] + b2_ref[...], 0.0)
    y3 = y.reshape(H, W, C4)

    # ---- 3x3 conv with padding=1 as ONE fused K=9*C4 matmul ----
    # Scatter the 9 shifted taps of y directly into the im2col scratch:
    #   win[i, j, t*C4:(t+1)*C4] = y[i+kh-1, j+kw-1, :]   (0 outside the image)
    # then run a single MXU matmul against the packed (9*C4, G) weight.
    for kh in range(3):
        for kw in range(3):
            t = kh * 3 + kw
            dh, dw = kh - 1, kw - 1
            c0, c1 = t * C4, (t + 1) * C4
            i0, i1 = max(0, -dh), H - max(0, dh)
            j0, j1 = max(0, -dw), W - max(0, dw)
            if dh != 0:                      # zero out-of-image row strip
                r = 0 if dh < 0 else H - 1
                win_ref[r:r + 1, :, c0:c1] = jnp.zeros((1, W, C4), jnp.float32)
            if dw != 0:                      # zero out-of-image col strip
                c = 0 if dw < 0 else W - 1
                win_ref[:, c:c + 1, c0:c1] = jnp.zeros((H, 1, C4), jnp.float32)
            win_ref[i0:i1, j0:j1, c0:c1] = \
                y3[i0 + dh:i1 + dh, j0 + dw:j1 + dw, :]

    win = win_ref[...].reshape(H * W, 9 * C4).astype(w2_ref.dtype)
    acc = jnp.dot(win, w2_ref[...], preferred_element_type=jnp.float32)  # (H*W, G)

    # ---- conv-only output; channel concat with x happens in the wrapper ----
    o_ref[0, :, :, :] = acc.reshape(H, W, G).astype(o_ref.dtype)


def bottleneck_forward_nhwc(x_nhwc, params, *, compute_dtype=jnp.bfloat16):
    """NHWC fast path: (N, H, W, Cin) f32 -> (N, H, W, G + Cin) f32."""
    N, H, W, Cin = x_nhwc.shape
    s1, b1, w1, s2, b2, w2f = (params["s1"], params["b1"], params["w1"],
                               params["s2"], params["b2"], params["w2"])
    C4 = w1.shape[1]
    G = w2f.shape[1]

    conv = pl.pallas_call(
        bottleneck_kernel,
        out_shape=jax.ShapeDtypeStruct((N, H, W, G), jnp.float32),
        grid_spec=pltpu.PrefetchScalarGridSpec(
            num_scalar_prefetch=0,
            grid=(N,),
            in_specs=[
                pl.BlockSpec((1, H, W, Cin), lambda n: (n, 0, 0, 0)),
                pl.BlockSpec((1, Cin),       lambda n: (0, 0)),
                pl.BlockSpec((1, Cin),       lambda n: (0, 0)),
                pl.BlockSpec((Cin, C4),      lambda n: (0, 0)),
                pl.BlockSpec((1, C4),        lambda n: (0, 0)),
                pl.BlockSpec((1, C4),        lambda n: (0, 0)),
                pl.BlockSpec((9 * C4, G),    lambda n: (0, 0)),
            ],
            out_specs=pl.BlockSpec((1, H, W, G), lambda n: (n, 0, 0, 0)),
            scratch_shapes=[pltpu.VMEM((H, W, 9 * C4), jnp.float32)],
        ),
        compiler_params=pltpu.CompilerParams(
            dimension_semantics=("parallel",)),
    )(x_nhwc.astype(compute_dtype),
      s1, b1, w1.astype(compute_dtype),
      s2, b2, w2f.astype(compute_dtype))

    # Lane-dense concat [conv_out, x]; x is not round-tripped through the kernel.
    return jnp.concatenate([conv, x_nhwc], axis=-1)


def bottleneck_forward(x_nchw, params, *, compute_dtype=jnp.bfloat16):
    """NCHW boundary adapter matching the PyTorch module interface.

    NOTE: in a full DenseNet, keep activations NHWC end-to-end and call
    bottleneck_forward_nhwc directly to avoid these per-layer HBM transposes.
    """
    out_nhwc = bottleneck_forward_nhwc(
        jnp.transpose(x_nchw, (0, 2, 3, 1)), params, compute_dtype=compute_dtype)
    return jnp.transpose(out_nhwc, (0, 3, 1, 2))


def make_params(key, in_planes, growth_rate):
    """Deterministic parameter init mirroring the module's __init__ shapes."""
    c4 = 4 * growth_rate
    eps = 1e-5
    ks = jax.random.split(key, 10)

    # BN1 / BN2 params (gamma, beta, running_mean, running_var)
    g1 = jax.random.uniform(ks[0], (in_planes,), minval=0.5, maxval=1.5)
    be1 = 0.1 * jax.random.normal(ks[1], (in_planes,))
    m1 = 0.1 * jax.random.normal(ks[2], (in_planes,))
    v1 = jax.random.uniform(ks[3], (in_planes,), minval=0.5, maxval=1.5)

    g2 = jax.random.uniform(ks[4], (c4,), minval=0.5, maxval=1.5)
    be2 = 0.1 * jax.random.normal(ks[5], (c4,))
    m2 = 0.1 * jax.random.normal(ks[6], (c4,))
    v2 = jax.random.uniform(ks[7], (c4,), minval=0.5, maxval=1.5)

    # Conv weights: torch layouts (out, in, kh, kw)
    w1_oihw = (jax.random.normal(ks[8], (c4, in_planes, 1, 1))
               * (2.0 / in_planes) ** 0.5).astype(jnp.float32)
    w2_oihw = (jax.random.normal(ks[9], (growth_rate, c4, 3, 3))
               * (2.0 / (9 * c4)) ** 0.5).astype(jnp.float32)

    # Fold BN (inference): scale = gamma / sqrt(var + eps), shift = beta - mean*scale
    s1 = (g1 / jnp.sqrt(v1 + eps)).astype(jnp.float32)
    b1 = (be1 - m1 * s1).astype(jnp.float32)
    s2 = (g2 / jnp.sqrt(v2 + eps)).astype(jnp.float32)
    b2 = (be2 - m2 * s2).astype(jnp.float32)

    params = {
        "s1": s1.reshape(1, in_planes), "b1": b1.reshape(1, in_planes),
        "w1": jnp.transpose(w1_oihw[:, :, 0, 0], (1, 0)),              # (Cin, C4)
        "s2": s2.reshape(1, c4), "b2": b2.reshape(1, c4),
        # (KH, KW, I, O) flattened -> (9*C4, G); row index = (kh*3+kw)*C4 + c
        "w2": jnp.transpose(w2_oihw, (2, 3, 1, 0)).reshape(9 * c4, growth_rate),
    }
    # keep torch-layout weights + raw BN params for the pure-JAX reference
    ref = {"g1": g1, "be1": be1, "m1": m1, "v1": v1,
           "g2": g2, "be2": be2, "m2": m2, "v2": v2,
           "w1_oihw": w1_oihw, "w2_oihw": w2_oihw, "eps": eps}
    return params, ref


def bottleneck_reference(x, ref, compute_dtype=jnp.bfloat16):
    """Pure-JAX NCHW reference matching the PyTorch forward (eval-mode BN),
    with the same mixed-precision policy as the kernel (conv operands in
    compute_dtype, f32 accumulation). With compute_dtype=float32 it is the
    exact f32 module semantics."""
    eps = ref["eps"]

    def bn(v, g, b, m, var):
        sh = (1, -1, 1, 1)
        return (v - m.reshape(sh)) / jnp.sqrt(var.reshape(sh) + eps) \
            * g.reshape(sh) + b.reshape(sh)

    dn = ("NCHW", "OIHW", "NCHW")
    xq = x.astype(compute_dtype).astype(jnp.float32)
    h = jnp.maximum(bn(xq, ref["g1"], ref["be1"], ref["m1"], ref["v1"]), 0.0)
    a1 = lax.conv_general_dilated(
        h.astype(compute_dtype), ref["w1_oihw"].astype(compute_dtype),
        (1, 1), "VALID", dimension_numbers=dn,
        preferred_element_type=jnp.float32)
    h2 = jnp.maximum(bn(a1, ref["g2"], ref["be2"], ref["m2"], ref["v2"]), 0.0)
    a2 = lax.conv_general_dilated(
        h2.astype(compute_dtype), ref["w2_oihw"].astype(compute_dtype),
        (1, 1), ((1, 1), (1, 1)), dimension_numbers=dn,
        preferred_element_type=jnp.float32)
    return jnp.concatenate([a2, x], axis=1)


if __name__ == "__main__":
    in_planes, growth_rate = 4, 8
    N, H, W = 2, 16, 16
    compute_dtype = jnp.bfloat16     # set jnp.float32 for exact f32 parity

    key = jax.random.PRNGKey(0)
    kx, kp = jax.random.split(key)
    x = jax.random.normal(kx, (N, in_planes, H, W), dtype=jnp.float32)
    params, ref = make_params(kp, in_planes, growth_rate)

    fwd = jax.jit(functools.partial(bottleneck_forward,
                                    compute_dtype=compute_dtype))
    out = jax.block_until_ready(fwd(x, params))

    expected = bottleneck_reference(x, ref, compute_dtype=compute_dtype)
    assert out.shape == (N, growth_rate + in_planes, H, W), out.shape
    tol = 1e-4 if compute_dtype == jnp.float32 else 2e-2
    if not jnp.allclose(out, expected, atol=tol, rtol=tol):
        raise AssertionError("Pallas kernel output mismatch vs JAX reference")

    print("KERNEL_OK")
</pallas_src>

<mosaic_0001>
module attributes {stable_mosaic.version = 11 : i64} {
  func.func @bottleneck_kernel(%arg0: i32, %arg1: memref<1x16x16x4xbf16, #tpu.memory_space<vmem>>, %arg2: memref<1x4xf32, #tpu.memory_space<vmem>>, %arg3: memref<1x4xf32, #tpu.memory_space<vmem>>, %arg4: memref<4x32xbf16, #tpu.memory_space<vmem>>, %arg5: memref<1x32xf32, #tpu.memory_space<vmem>>, %arg6: memref<1x32xf32, #tpu.memory_space<vmem>>, %arg7: memref<288x8xbf16, #tpu.memory_space<vmem>>, %arg8: memref<1x16x16x8xf32, #tpu.memory_space<vmem>>, %arg9: memref<16x16x288xf32, #tpu.memory_space<vmem>>) attributes {dimension_semantics = [#tpu.dimension_semantics<parallel>], iteration_bounds = array<i64: 2>, scalar_prefetch = 0 : i64, scratch_operands = 1 : i64, tpu.core_type = #tpu.core_type<tc>, window_params = [{transform_indices = @transform_0, window_bounds = array<i64: 1, 16, 16, 4>}, {pipeline_mode = #tpu.pipeline_mode<synchronous>, transform_indices = @transform_1, window_bounds = array<i64: 1, 4>}, {pipeline_mode = #tpu.pipeline_mode<synchronous>, transform_indices = @transform_2, window_bounds = array<i64: 1, 4>}, {pipeline_mode = #tpu.pipeline_mode<synchronous>, transform_indices = @transform_3, window_bounds = array<i64: 4, 32>}, {pipeline_mode = #tpu.pipeline_mode<synchronous>, transform_indices = @transform_4, window_bounds = array<i64: 1, 32>}, {pipeline_mode = #tpu.pipeline_mode<synchronous>, transform_indices = @transform_5, window_bounds = array<i64: 1, 32>}, {pipeline_mode = #tpu.pipeline_mode<synchronous>, transform_indices = @transform_6, window_bounds = array<i64: 288, 8>}, {transform_indices = @transform_7, window_bounds = array<i64: 1, 16, 16, 8>}]} {
    %c0 = arith.constant 0 : index
    %c0_0 = arith.constant 0 : index
    %c0_1 = arith.constant 0 : index
    %c0_2 = arith.constant 0 : index
    %0 = vector.load %arg1[%c0, %c0_0, %c0_1, %c0_2] : memref<1x16x16x4xbf16, #tpu.memory_space<vmem>>, vector<1x16x16x4xbf16>
    %1 = vector.shape_cast %0 : vector<1x16x16x4xbf16> to vector<16x16x4xbf16>
    %2 = arith.extf %1 : vector<16x16x4xbf16> to vector<16x16x4xf32>
    %3 = vector.shape_cast %2 : vector<16x16x4xf32> to vector<256x4xf32>
    %c0_3 = arith.constant 0 : index
    %c0_4 = arith.constant 0 : index
    %4 = vector.load %arg2[%c0_3, %c0_4] : memref<1x4xf32, #tpu.memory_space<vmem>>, vector<1x4xf32>
    %5 = vector.broadcast %4 : vector<1x4xf32> to vector<256x4xf32>
    %6 = arith.mulf %3, %5 : vector<256x4xf32>
    %c0_5 = arith.constant 0 : index
    %c0_6 = arith.constant 0 : index
    %7 = vector.load %arg3[%c0_5, %c0_6] : memref<1x4xf32, #tpu.memory_space<vmem>>, vector<1x4xf32>
    %8 = vector.broadcast %7 : vector<1x4xf32> to vector<256x4xf32>
    %9 = arith.addf %6, %8 : vector<256x4xf32>
    %cst = arith.constant 0.000000e+00 : f32
    %10 = vector.broadcast %cst : f32 to vector<256x4xf32>
    %11 = arith.maximumf %9, %10 : vector<256x4xf32>
    %12 = arith.truncf %11 : vector<256x4xf32> to vector<256x4xbf16>
    %c0_7 = arith.constant 0 : index
    %c0_8 = arith.constant 0 : index
    %13 = vector.load %arg4[%c0_7, %c0_8] : memref<4x32xbf16, #tpu.memory_space<vmem>>, vector<4x32xbf16>
    %cst_9 = arith.constant dense<0.000000e+00> : vector<256x32xf32>
    %14 = tpu.matmul %12, %13, %cst_9 {dimension_numbers = #tpu.dot_dimension_numbers<[1], [0], [0], [1], [0, 0, 1, 1], [], []>} : vector<256x4xbf16>, vector<4x32xbf16>, vector<256x32xf32> -> vector<256x32xf32>
    %c0_10 = arith.constant 0 : index
    %c0_11 = arith.constant 0 : index
    %15 = vector.load %arg5[%c0_10, %c0_11] : memref<1x32xf32, #tpu.memory_space<vmem>>, vector<1x32xf32>
    %16 = vector.broadcast %15 : vector<1x32xf32> to vector<256x32xf32>
    %17 = arith.mulf %14, %16 : vector<256x32xf32>
    %c0_12 = arith.constant 0 : index
    %c0_13 = arith.constant 0 : index
    %18 = vector.load %arg6[%c0_12, %c0_13] : memref<1x32xf32, #tpu.memory_space<vmem>>, vector<1x32xf32>
    %19 = vector.broadcast %18 : vector<1x32xf32> to vector<256x32xf32>
    %20 = arith.addf %17, %19 : vector<256x32xf32>
    %cst_14 = arith.constant 0.000000e+00 : f32
    %21 = vector.broadcast %cst_14 : f32 to vector<256x32xf32>
    %22 = arith.maximumf %20, %21 : vector<256x32xf32>
    %23 = vector.shape_cast %22 : vector<256x32xf32> to vector<16x16x32xf32>
    %cst_15 = arith.constant 0.000000e+00 : f32
    %24 = vector.broadcast %cst_15 : f32 to vector<1x16x32xf32>
    %c0_16 = arith.constant 0 : index
    %c0_17 = arith.constant 0 : index
    %c0_18 = arith.constant 0 : index
    %25 = vector.load %arg9[%c0_16, %c0_17, %c0_18] : memref<16x16x288xf32, #tpu.memory_space<vmem>>, vector<1x16x32xf32>
    tpu.vector_store %arg9[%c0_16, %c0_17, %c0_18], %24 {strides = array<i32>} : memref<16x16x288xf32, #tpu.memory_space<vmem>>, vector<1x16x32xf32>,
    %cst_19 = arith.constant 0.000000e+00 : f32
    %26 = vector.broadcast %cst_19 : f32 to vector<16x1x32xf32>
    %c0_20 = arith.constant 0 : index
    %c0_21 = arith.constant 0 : index
    %c0_22 = arith.constant 0 : index
    %27 = vector.load %arg9[%c0_20, %c0_21, %c0_22] : memref<16x16x288xf32, #tpu.memory_space<vmem>>, vector<16x1x32xf32>
    tpu.vector_store %arg9[%c0_20, %c0_21, %c0_22], %26 {strides = array<i32>} : memref<16x16x288xf32, #tpu.memory_space<vmem>>, vector<16x1x32xf32>,
    %28 = vector.extract_strided_slice %23 {offsets = [0, 0, 0], sizes = [15, 15, 32], strides = [1, 1, 1]} : vector<16x16x32xf32> to vector<15x15x32xf32>
    %c1 = arith.constant 1 : index
    %c1_23 = arith.constant 1 : index
    %c0_24 = arith.constant 0 : index
    %29 = vector.load %arg9[%c1, %c1_23, %c0_24] : memref<16x16x288xf32, #tpu.memory_space<vmem>>, vector<15x15x32xf32>
    tpu.vector_store %arg9[%c1, %c1_23, %c0_24], %28 {strides = array<i32>} : memref<16x16x288xf32, #tpu.memory_space<vmem>>, vector<15x15x32xf32>,
    %cst_25 = arith.constant 0.000000e+00 : f32
    %30 = vector.broadcast %cst_25 : f32 to vector<1x16x32xf32>
    %c0_26 = arith.constant 0 : index
    %c0_27 = arith.constant 0 : index
    %c32 = arith.constant 32 : index
    %31 = vector.load %arg9[%c0_26, %c0_27, %c32] : memref<16x16x288xf32, #tpu.memory_space<vmem>>, vector<1x16x32xf32>
    tpu.vector_store %arg9[%c0_26, %c0_27, %c32], %30 {strides = array<i32>} : memref<16x16x288xf32, #tpu.memory_space<vmem>>, vector<1x16x32xf32>,
    %32 = vector.extract_strided_slice %23 {offsets = [0, 0, 0], sizes = [15, 16, 32], strides = [1, 1, 1]} : vector<16x16x32xf32> to vector<15x16x32xf32>
    %c1_28 = arith.constant 1 : index
    %c0_29 = arith.constant 0 : index
    %c32_30 = arith.constant 32 : index
    %33 = vector.load %arg9[%c1_28, %c0_29, %c32_30] : memref<16x16x288xf32, #tpu.memory_space<vmem>>, vector<15x16x32xf32>
    tpu.vector_store %arg9[%c1_28, %c0_29, %c32_30], %32 {strides = array<i32>} : memref<16x16x288xf32, #tpu.memory_space<vmem>>, vector<15x16x32xf32>,
    %cst_31 = arith.constant 0.000000e+00 : f32
    %34 = vector.broadcast %cst_31 : f32 to vector<1x16x32xf32>
    %c0_32 = arith.constant 0 : index
    %c0_33 = arith.constant 0 : index
    %c64 = arith.constant 64 : index
    %35 = vector.load %arg9[%c0_32, %c0_33, %c64] : memref<16x16x288xf32, #tpu.memory_space<vmem>>, vector<1x16x32xf32>
    tpu.vector_store %arg9[%c0_32, %c0_33, %c64], %34 {strides = array<i32>} : memref<16x16x288xf32, #tpu.memory_space<vmem>>, vector<1x16x32xf32>,
    %cst_34 = arith.constant 0.000000e+00 : f32
    %36 = vector.broadcast %cst_34 : f32 to vector<16x1x32xf32>
    %c0_35 = arith.constant 0 : index
    %c15 = arith.constant 15 : index
    %c64_36 = arith.constant 64 : index
    %37 = vector.load %arg9[%c0_35, %c15, %c64_36] : memref<16x16x288xf32, #tpu.memory_space<vmem>>, vector<16x1x32xf32>
    tpu.vector_store %arg9[%c0_35, %c15, %c64_36], %36 {strides = array<i32>} : memref<16x16x288xf32, #tpu.memory_space<vmem>>, vector<16x1x32xf32>,
    %38 = vector.extract_strided_slice %23 {offsets = [0, 1, 0], sizes = [15, 15, 32], strides = [1, 1, 1]} : vector<16x16x32xf32> to vector<15x15x32xf32>
    %c1_37 = arith.constant 1 : index
    %c0_38 = arith.constant 0 : index
    %c64_39 = arith.constant 64 : index
    %39 = vector.load %arg9[%c1_37, %c0_38, %c64_39] : memref<16x16x288xf32, #tpu.memory_space<vmem>>, vector<15x15x32xf32>
    tpu.vector_store %arg9[%c1_37, %c0_38, %c64_39], %38 {strides = array<i32>} : memref<16x16x288xf32, #tpu.memory_space<vmem>>, vector<15x15x32xf32>,
    %cst_40 = arith.constant 0.000000e+00 : f32
    %40 = vector.broadcast %cst_40 : f32 to vector<16x1x32xf32>
    %c0_41 = arith.constant 0 : index
    %c0_42 = arith.constant 0 : index
    %c96 = arith.constant 96 : index
    %41 = vector.load %arg9[%c0_41, %c0_42, %c96] : memref<16x16x288xf32, #tpu.memory_space<vmem>>, vector<16x1x32xf32>
    tpu.vector_store %arg9[%c0_41, %c0_42, %c96], %40 {strides = array<i32>} : memref<16x16x288xf32, #tpu.memory_space<vmem>>, vector<16x1x32xf32>,
    %42 = vector.extract_strided_slice %23 {offsets = [0, 0, 0], sizes = [16, 15, 32], strides = [1, 1, 1]} : vector<16x16x32xf32> to vector<16x15x32xf32>
    %c0_43 = arith.constant 0 : index
    %c1_44 = arith.constant 1 : index
    %c96_45 = arith.constant 96 : index
    %43 = vector.load %arg9[%c0_43, %c1_44, %c96_45] : memref<16x16x288xf32, #tpu.memory_space<vmem>>, vector<16x15x32xf32>
    tpu.vector_store %arg9[%c0_43, %c1_44, %c96_45], %42 {strides = array<i32>} : memref<16x16x288xf32, #tpu.memory_space<vmem>>, vector<16x15x32xf32>,
    %c0_46 = arith.constant 0 : index
    %c0_47 = arith.constant 0 : index
    %c128 = arith.constant 128 : index
    %44 = vector.load %arg9[%c0_46, %c0_47, %c128] : memref<16x16x288xf32, #tpu.memory_space<vmem>>, vector<16x16x32xf32>
    tpu.vector_store %arg9[%c0_46, %c0_47, %c128], %23 {strides = array<i32>} : memref<16x16x288xf32, #tpu.memory_space<vmem>>, vector<16x16x32xf32>,
    %cst_48 = arith.constant 0.000000e+00 : f32
    %45 = vector.broadcast %cst_48 : f32 to vector<16x1x32xf32>
    %c0_49 = arith.constant 0 : index
    %c15_50 = arith.constant 15 : index
    %c160 = arith.constant 160 : index
    %46 = vector.load %arg9[%c0_49, %c15_50, %c160] : memref<16x16x288xf32, #tpu.memory_space<vmem>>, vector<16x1x32xf32>
    tpu.vector_store %arg9[%c0_49, %c15_50, %c160], %45 {strides = array<i32>} : memref<16x16x288xf32, #tpu.memory_space<vmem>>, vector<16x1x32xf32>,
    %47 = vector.extract_strided_slice %23 {offsets = [0, 1, 0], sizes = [16, 15, 32], strides = [1, 1, 1]} : vector<16x16x32xf32> to vector<16x15x32xf32>
    %c0_51 = arith.constant 0 : index
    %c0_52 = arith.constant 0 : index
    %c160_53 = arith.constant 160 : index
    %48 = vector.load %arg9[%c0_51, %c0_52, %c160_53] : memref<16x16x288xf32, #tpu.memory_space<vmem>>, vector<16x15x32xf32>
    tpu.vector_store %arg9[%c0_51, %c0_52, %c160_53], %47 {strides = array<i32>} : memref<16x16x288xf32, #tpu.memory_space<vmem>>, vector<16x15x32xf32>,
    %cst_54 = arith.constant 0.000000e+00 : f32
    %49 = vector.broadcast %cst_54 : f32 to vector<1x16x32xf32>
    %c15_55 = arith.constant 15 : index
    %c0_56 = arith.constant 0 : index
    %c192 = arith.constant 192 : index
    %50 = vector.load %arg9[%c15_55, %c0_56, %c192] : memref<16x16x288xf32, #tpu.memory_space<vmem>>, vector<1x16x32xf32>
    tpu.vector_store %arg9[%c15_55, %c0_56, %c192], %49 {strides = array<i32>} : memref<16x16x288xf32, #tpu.memory_space<vmem>>, vector<1x16x32xf32>,
    %cst_57 = arith.constant 0.000000e+00 : f32
    %51 = vector.broadcast %cst_57 : f32 to vector<16x1x32xf32>
    %c0_58 = arith.constant 0 : index
    %c0_59 = arith.constant 0 : index
    %c192_60 = arith.constant 192 : index
    %52 = vector.load %arg9[%c0_58, %c0_59, %c192_60] : memref<16x16x288xf32, #tpu.memory_space<vmem>>, vector<16x1x32xf32>
    tpu.vector_store %arg9[%c0_58, %c0_59, %c192_60], %51 {strides = array<i32>} : memref<16x16x288xf32, #tpu.memory_space<vmem>>, vector<16x1x32xf32>,
    %53 = vector.extract_strided_slice %23 {offsets = [1, 0, 0], sizes = [15, 15, 32], strides = [1, 1, 1]} : vector<16x16x32xf32> to vector<15x15x32xf32>
    %c0_61 = arith.constant 0 : index
    %c1_62 = arith.constant 1 : index
    %c192_63 = arith.constant 192 : index
    %54 = vector.load %arg9[%c0_61, %c1_62, %c192_63] : memref<16x16x288xf32, #tpu.memory_space<vmem>>, vector<15x15x32xf32>
    tpu.vector_store %arg9[%c0_61, %c1_62, %c192_63], %53 {strides = array<i32>} : memref<16x16x288xf32, #tpu.memory_space<vmem>>, vector<15x15x32xf32>,
    %cst_64 = arith.constant 0.000000e+00 : f32
    %55 = vector.broadcast %cst_64 : f32 to vector<1x16x32xf32>
    %c15_65 = arith.constant 15 : index
    %c0_66 = arith.constant 0 : index
    %c224 = arith.constant 224 : index
    %56 = vector.load %arg9[%c15_65, %c0_66, %c224] : memref<16x16x288xf32, #tpu.memory_space<vmem>>, vector<1x16x32xf32>
    tpu.vector_store %arg9[%c15_65, %c0_66, %c224], %55 {strides = array<i32>} : memref<16x16x288xf32, #tpu.memory_space<vmem>>, vector<1x16x32xf32>,
    %57 = vector.extract_strided_slice %23 {offsets = [1, 0, 0], sizes = [15, 16, 32], strides = [1, 1, 1]} : vector<16x16x32xf32> to vector<15x16x32xf32>
    %c0_67 = arith.constant 0 : index
    %c0_68 = arith.constant 0 : index
    %c224_69 = arith.constant 224 : index
    %58 = vector.load %arg9[%c0_67, %c0_68, %c224_69] : memref<16x16x288xf32, #tpu.memory_space<vmem>>, vector<15x16x32xf32>
    tpu.vector_store %arg9[%c0_67, %c0_68, %c224_69], %57 {strides = array<i32>} : memref<16x16x288xf32, #tpu.memory_space<vmem>>, vector<15x16x32xf32>,
    %cst_70 = arith.constant 0.000000e+00 : f32
    %59 = vector.broadcast %cst_70 : f32 to vector<1x16x32xf32>
    %c15_71 = arith.constant 15 : index
    %c0_72 = arith.constant 0 : index
    %c256 = arith.constant 256 : index
    %60 = vector.load %arg9[%c15_71, %c0_72, %c256] : memref<16x16x288xf32, #tpu.memory_space<vmem>>, vector<1x16x32xf32>
    tpu.vector_store %arg9[%c15_71, %c0_72, %c256], %59 {strides = array<i32>} : memref<16x16x288xf32, #tpu.memory_space<vmem>>, vector<1x16x32xf32>,
    %cst_73 = arith.constant 0.000000e+00 : f32
    %61 = vector.broadcast %cst_73 : f32 to vector<16x1x32xf32>
    %c0_74 = arith.constant 0 : index
    %c15_75 = arith.constant 15 : index
    %c256_76 = arith.constant 256 : index
    %62 = vector.load %arg9[%c0_74, %c15_75, %c256_76] : memref<16x16x288xf32, #tpu.memory_space<vmem>>, vector<16x1x32xf32>
    tpu.vector_store %arg9[%c0_74, %c15_75, %c256_76], %61 {strides = array<i32>} : memref<16x16x288xf32, #tpu.memory_space<vmem>>, vector<16x1x32xf32>,
    %63 = vector.extract_strided_slice %23 {offsets = [1, 1, 0], sizes = [15, 15, 32], strides = [1, 1, 1]} : vector<16x16x32xf32> to vector<15x15x32xf32>
    %c0_77 = arith.constant 0 : index
    %c0_78 = arith.constant 0 : index
    %c256_79 = arith.constant 256 : index
    %64 = vector.load %arg9[%c0_77, %c0_78, %c256_79] : memref<16x16x288xf32, #tpu.memory_space<vmem>>, vector<15x15x32xf32>
    tpu.vector_store %arg9[%c0_77, %c0_78, %c256_79], %63 {strides = array<i32>} : memref<16x16x288xf32, #tpu.memory_space<vmem>>, vector<15x15x32xf32>,
    %c0_80 = arith.constant 0 : index
    %c0_81 = arith.constant 0 : index
    %c0_82 = arith.constant 0 : index
    %65 = vector.load %arg9[%c0_80, %c0_81, %c0_82] : memref<16x16x288xf32, #tpu.memory_space<vmem>>, vector<16x16x288xf32>
    %66 = vector.shape_cast %65 : vector<16x16x288xf32> to vector<256x288xf32>
    %67 = arith.truncf %66 : vector<256x288xf32> to vector<256x288xbf16>
    %c0_83 = arith.constant 0 : index
    %c0_84 = arith.constant 0 : index
    %68 = vector.load %arg7[%c0_83, %c0_84] : memref<288x8xbf16, #tpu.memory_space<vmem>>, vector<288x8xbf16>
    %cst_85 = arith.constant dense<0.000000e+00> : vector<256x8xf32>
    %69 = tpu.matmul %67, %68, %cst_85 {dimension_numbers = #tpu.dot_dimension_numbers<[1], [0], [0], [1], [0, 0, 1, 1], [], []>} : vector<256x288xbf16>, vector<288x8xbf16>, vector<256x8xf32> -> vector<256x8xf32>
    %70 = vector.shape_cast %69 : vector<256x8xf32> to vector<16x16x8xf32>
    %c0_86 = arith.constant 0 : index
    %c0_87 = arith.constant 0 : index
    %c0_88 = arith.constant 0 : index
    %c0_89 = arith.constant 0 : index
    %71 = vector.load %arg8[%c0_86, %c0_87, %c0_88, %c0_89] : memref<1x16x16x8xf32, #tpu.memory_space<vmem>>, vector<1x16x16x8xf32>
    %72 = vector.shape_cast %71 : vector<1x16x16x8xf32> to vector<16x16x8xf32>
    %73 = vector.shape_cast %70 : vector<16x16x8xf32> to vector<1x16x16x8xf32>
    tpu.vector_store %arg8[%c0_86, %c0_87, %c0_88, %c0_89], %73 {strides = array<i32>} : memref<1x16x16x8xf32, #tpu.memory_space<vmem>>, vector<1x16x16x8xf32>,
    return
  }
  func.func @transform_0(%arg0: i32) -> (i32, i32, i32, i32) {
    %c0_i32 = arith.constant 0 : i32
    %c0_i32_0 = arith.constant 0 : i32
    %c0_i32_1 = arith.constant 0 : i32
    %c0_i32_2 = arith.constant 0 : i32
    return %arg0, %c0_i32, %c0_i32_0, %c0_i32_1 : i32, i32, i32, i32
  }
  func.func @transform_1(%arg0: i32) -> (i32, i32) {
    %c0_i32 = arith.constant 0 : i32
    %c0_i32_0 = arith.constant 0 : i32
    %c0_i32_1 = arith.constant 0 : i32
    return %c0_i32, %c0_i32_0 : i32, i32
  }
  func.func @transform_2(%arg0: i32) -> (i32, i32) {
    %c0_i32 = arith.constant 0 : i32
    %c0_i32_0 = arith.constant 0 : i32
    %c0_i32_1 = arith.constant 0 : i32
    return %c0_i32, %c0_i32_0 : i32, i32
  }
  func.func @transform_3(%arg0: i32) -> (i32, i32) {
    %c0_i32 = arith.constant 0 : i32
    %c0_i32_0 = arith.constant 0 : i32
    %c0_i32_1 = arith.constant 0 : i32
    return %c0_i32, %c0_i32_0 : i32, i32
  }
  func.func @transform_4(%arg0: i32) -> (i32, i32) {
    %c0_i32 = arith.constant 0 : i32
    %c0_i32_0 = arith.constant 0 : i32
    %c0_i32_1 = arith.constant 0 : i32
    return %c0_i32, %c0_i32_0 : i32, i32
  }
  func.func @transform_5(%arg0: i32) -> (i32, i32) {
    %c0_i32 = arith.constant 0 : i32
    %c0_i32_0 = arith.constant 0 : i32
    %c0_i32_1 = arith.constant 0 : i32
    return %c0_i32, %c0_i32_0 : i32, i32
  }
  func.func @transform_6(%arg0: i32) -> (i32, i32) {
    %c0_i32 = arith.constant 0 : i32
    %c0_i32_0 = arith.constant 0 : i32
    %c0_i32_1 = arith.constant 0 : i32
    return %c0_i32, %c0_i32_0 : i32, i32
  }
  func.func @transform_7(%arg0: i32) -> (i32, i32, i32, i32) {
    %c0_i32 = arith.constant 0 : i32
    %c0_i32_0 = arith.constant 0 : i32
    %c0_i32_1 = arith.constant 0 : i32
    %c0_i32_2 = arith.constant 0 : i32
    return %arg0, %c0_i32, %c0_i32_0, %c0_i32_1 : i32, i32, i32, i32
  }
}

</mosaic_0001>

<llo_original>
// kernel: bottleneck_forward.1
$region0: #{bottleneck_forward.1}
  #allocation0 [shape = 'u32[]', space=smem, size = 0x4, offset = 0x4, fixed_abs, tag = 'smem constant byte address 0x4 - core index']
  #allocation1 [shape = 'u32[144,128]{1,0:T(1,128)}', space=vmem, size = 0x12000, scoped, tag = 'internal scratch']
  #allocation2 [shape = 'f32[16,16,288]{2,1,0:T(8,128)}', space=vmem, size = 0x60000, scoped, tag = 'scratch operand']
  %s0 = inlined_call_operand.vmem [shape: bf16[2,16,16,4], index: 0, kind: input, shape index: {}]
  %s1 = inlined_call_operand.vmem [shape: f32[1,4], index: 1, kind: input, shape index: {}]
  %s2 = inlined_call_operand.vmem [shape: f32[1,4], index: 2, kind: input, shape index: {}]
  %s3 = inlined_call_operand.vmem [shape: bf16[4,32], index: 3, kind: input, shape index: {}]
  %s4 = inlined_call_operand.vmem [shape: f32[1,32], index: 4, kind: input, shape index: {}]
  %s5 = inlined_call_operand.vmem [shape: f32[1,32], index: 5, kind: input, shape index: {}]
  %s6 = inlined_call_operand.vmem [shape: bf16[288,8], index: 6, kind: input, shape index: {}]
  %s7 = inlined_call_operand.vmem [shape: f32[2,16,16,8], index: 7, kind: output, shape index: {}]
  %s8 = sld [smem:[#allocation0]]
  $region61: #{bottleneck_forward.1} parent=0
    _
  %s10 = ssub.s32 1, %s8
  %s11 = scalar_select 0, %s10, %s8
  loop: start=0, step=1, limit=4
  $region2: #{bottleneck_forward.1} parent=0 // loop_pre_header
    _
  $region3: #{bottleneck_forward.1} parent=0 // loop_header
    %s13 = sphi 0, %s17
    %p14 = scmp.ge.s32.totalorder %s13, 4
    %s23 = sphi 0, %s25
    %s26 = sphi 0, %s23
    %s27 = sphi 0, %s26
    %s43 = sphi 0, %s27
    %s47 = sphi 0, %s47
    %s49 = sphi 0, %s47
    %s50 = sphi 0, %s49
    %s64 = sphi 0, %s50
    %s68 = sphi 0, %s68
    %s70 = sphi 0, %s68
    %s71 = sphi 0, %s70
    %s85 = sphi 0, %s71
    %s89 = sphi 0, %s89
    %s91 = sphi 0, %s89
    %s92 = sphi 0, %s91
    %s106 = sphi 0, %s92
    %s110 = sphi 0, %s110
    %s112 = sphi 0, %s110
    %s113 = sphi 0, %s112
    %s127 = sphi 0, %s113
    %s131 = sphi 0, %s131
    %s133 = sphi 0, %s131
    %s134 = sphi 0, %s133
    %s148 = sphi 0, %s134
    %s152 = sphi 0, %s152
    %s154 = sphi 0, %s152
    %s155 = sphi 0, %s154
    %s169 = sphi 0, %s155
    %s175 = sphi 0, %s177
    %s178 = sphi 0, %s175
    %s179 = sphi 0, %s178
    %s195 = sphi 0, %s179
  $region4: #{bottleneck_forward.1} parent=0 // loop_header_branch
    %16 = sbr.rel (%p14) target = $region8
  $region5: #{bottleneck_forward.1} parent=0 // loop_body
    %s18 = ssub.s32 %s13, 1
    %s19 = ssub.s32 %s13, 2
    %s20 = sadd.s32 %s13, 1
    %s21 = ssub.s32 %s13, %s20
    %p22 = scmp.eq.s32.totalorder %s21, 0
    %s24 = sadd.s32 %s23, 1
    %s25 = scalar_select %p22, %s23, %s24
    %p28 = pneg %p22
    %p29 = scmp.eq.s32.totalorder %s13, 1
    %p30 = por %p28, %p29
    %p31 = scmp.ne.s32.totalorder %s23, %s26
    %p32 = scmp.eq.s32.totalorder %s13, 0
    %p33 = por %p31, %p32
    %p34 = scmp.ne.s32.totalorder %s23, %s26
    %p35 = scmp.eq.s32.totalorder %s18, 1
    %p36 = por %p34, %p35
    %p37 = scmp.ne.s32.totalorder %s26, %s27
    %p38 = scmp.eq.s32.totalorder %s18, 0
    %p39 = por %p37, %p38
    %p40 = scmp.ne.s32.totalorder %s26, %s27
    %p41 = scmp.eq.s32.totalorder %s19, 1
    %p42 = por %p40, %p41
    %p44 = scmp.ne.s32.totalorder %s27, %s43
    %p45 = scmp.eq.s32.totalorder %s19, 0
    %p46 = por %p44, %p45
    %s48 = sadd.s32 %s47, 1
    %p51 = scmp.eq.s32.totalorder %s13, 1
    %p52 = scmp.ne.s32.totalorder %s47, %s49
    %p53 = scmp.eq.s32.totalorder %s13, 0
    %p54 = por %p52, %p53
    %p55 = scmp.ne.s32.totalorder %s47, %s49
    %p56 = scmp.eq.s32.totalorder %s18, 1
    %p57 = por %p55, %p56
    %p58 = scmp.ne.s32.totalorder %s49, %s50
    %p59 = scmp.eq.s32.totalorder %s18, 0
    %p60 = por %p58, %p59
    %p61 = scmp.ne.s32.totalorder %s49, %s50
    %p62 = scmp.eq.s32.totalorder %s19, 1
    %p63 = por %p61, %p62
    %p65 = scmp.ne.s32.totalorder %s50, %s64
    %p66 = scmp.eq.s32.totalorder %s19, 0
    %p67 = por %p65, %p66
    %s69 = sadd.s32 %s68, 1
    %p72 = scmp.eq.s32.totalorder %s13, 1
    %p73 = scmp.ne.s32.totalorder %s68, %s70
    %p74 = scmp.eq.s32.totalorder %s13, 0
    %p75 = por %p73, %p74
    %p76 = scmp.ne.s32.totalorder %s68, %s70
    %p77 = scmp.eq.s32.totalorder %s18, 1
    %p78 = por %p76, %p77
    %p79 = scmp.ne.s32.totalorder %s70, %s71
    %p80 = scmp.eq.s32.totalorder %s18, 0
    %p81 = por %p79, %p80
    %p82 = scmp.ne.s32.totalorder %s70, %s71
    %p83 = scmp.eq.s32.totalorder %s19, 1
    %p84 = por %p82, %p83
    %p86 = scmp.ne.s32.totalorder %s71, %s85
    %p87 = scmp.eq.s32.totalorder %s19, 0
    %p88 = por %p86, %p87
    %s90 = sadd.s32 %s89, 1
    %p93 = scmp.eq.s32.totalorder %s13, 1
    %p94 = scmp.ne.s32.totalorder %s89, %s91
    %p95 = scmp.eq.s32.totalorder %s13, 0
    %p96 = por %p94, %p95
    %p97 = scmp.ne.s32.totalorder %s89, %s91
    %p98 = scmp.eq.s32.totalorder %s18, 1
    %p99 = por %p97, %p98
    %p100 = scmp.ne.s32.totalorder %s91, %s92
    %p101 = scmp.eq.s32.totalorder %s18, 0
    %p102 = por %p100, %p101
    %p103 = scmp.ne.s32.totalorder %s91, %s92
    %p104 = scmp.eq.s32.totalorder %s19, 1
    %p105 = por %p103, %p104
    %p107 = scmp.ne.s32.totalorder %s92, %s106
    %p108 = scmp.eq.s32.totalorder %s19, 0
    %p109 = por %p107, %p108
    %s111 = sadd.s32 %s110, 1
    %p114 = scmp.eq.s32.totalorder %s13, 1
    %p115 = scmp.ne.s32.totalorder %s110, %s112
    %p116 = scmp.eq.s32.totalorder %s13, 0
    %p117 = por %p115, %p116
    %p118 = scmp.ne.s32.totalorder %s110, %s112
    %p119 = scmp.eq.s32.totalorder %s18, 1
    %p120 = por %p118, %p119
    %p121 = scmp.ne.s32.totalorder %s112, %s113
    %p122 = scmp.eq.s32.totalorder %s18, 0
    %p123 = por %p121, %p122
    %p124 = scmp.ne.s32.totalorder %s112, %s113
    %p125 = scmp.eq.s32.totalorder %s19, 1
    %p126 = por %p124, %p125
    %p128 = scmp.ne.s32.totalorder %s113, %s127
    %p129 = scmp.eq.s32.totalorder %s19, 0
    %p130 = por %p128, %p129
    %s132 = sadd.s32 %s131, 1
    %p135 = scmp.eq.s32.totalorder %s13, 1
    %p136 = scmp.ne.s32.totalorder %s131, %s133
    %p137 = scmp.eq.s32.totalorder %s13, 0
    %p138 = por %p136, %p137
    %p139 = scmp.ne.s32.totalorder %s131, %s133
    %p140 = scmp.eq.s32.totalorder %s18, 1
    %p141 = por %p139, %p140
    %p142 = scmp.ne.s32.totalorder %s133, %s134
    %p143 = scmp.eq.s32.totalorder %s18, 0
    %p144 = por %p142, %p143
    %p145 = scmp.ne.s32.totalorder %s133, %s134
    %p146 = scmp.eq.s32.totalorder %s19, 1
    %p147 = por %p145, %p146
    %p149 = scmp.ne.s32.totalorder %s134, %s148
    %p150 = scmp.eq.s32.totalorder %s19, 0
    %p151 = por %p149, %p150
    %s153 = sadd.s32 %s152, 1
    %p156 = scmp.eq.s32.totalorder %s13, 1
    %p157 = scmp.ne.s32.totalorder %s152, %s154
    %p158 = scmp.eq.s32.totalorder %s13, 0
    %p159 = por %p157, %p158
    %p160 = scmp.ne.s32.totalorder %s152, %s154
    %p161 = scmp.eq.s32.totalorder %s18, 1
    %p162 = por %p160, %p161
    %p163 = scmp.ne.s32.totalorder %s154, %s155
    %p164 = scmp.eq.s32.totalorder %s18, 0
    %p165 = por %p163, %p164
    %p166 = scmp.ne.s32.totalorder %s154, %s155
    %p167 = scmp.eq.s32.totalorder %s19, 1
    %p168 = por %p166, %p167
    %p170 = scmp.ne.s32.totalorder %s155, %s169
    %p171 = scmp.eq.s32.totalorder %s19, 0
    %p172 = por %p170, %p171
    %s173 = ssub.s32 %s13, %s20
    %p174 = scmp.eq.s32.totalorder %s173, 0
    %s176 = sadd.s32 %s175, 1
    %s177 = scalar_select %p174, %s175, %s176
    %p180 = pneg %p174
    %p181 = scmp.eq.s32.totalorder %s13, 1
    %p182 = por %p180, %p181
    %p183 = scmp.ne.s32.totalorder %s175, %s178
    %p184 = scmp.eq.s32.totalorder %s13, 0
    %p185 = por %p183, %p184
    %p186 = scmp.ne.s32.totalorder %s175, %s178
    %p187 = scmp.eq.s32.totalorder %s18, 1
    %p188 = por %p186, %p187
    %p189 = scmp.ne.s32.totalorder %s178, %s179
    %p190 = scmp.eq.s32.totalorder %s18, 0
    %p191 = por %p189, %p190
    %p192 = scmp.ne.s32.totalorder %s178, %s179
    %p193 = scmp.eq.s32.totalorder %s19, 1
    %p194 = por %p192, %p193
    %p196 = scmp.ne.s32.totalorder %s179, %s195
    %p197 = scmp.eq.s32.totalorder %s19, 0
    %p198 = por %p196, %p197
    %p199 = scmp.le.s32.totalorder 1, %s13
    %p200 = scmp.lt.s32.totalorder %s13, 3
    %p201 = pnand %p199, %p200
    %p202 = pneg %p201
    // Predicated region
    $region9: #{bottleneck_forward.1} parent=5 // pred_check
      _
    $region10: #{bottleneck_forward.1} parent=5 // pred_check_branch
      %204 = sbr.rel (%p201) target = $region12
    $region11: #{bottleneck_forward.1} parent=5 // pred_region
      %s205 = ssub.s32 %s13, 1
      // Predicated region
      $region13: #{bottleneck_forward.1} parent=11 // pred_check
        %p206 = pneg %p60
      $region14: #{bottleneck_forward.1} parent=11 // pred_check_branch
        %208 = sbr.rel (%p206) target = $region16
      $region15: #{bottleneck_forward.1} parent=11 // pred_region
        _
      $region16: #{bottleneck_forward.1} parent=11 // pred_fallthru
        _
      // Predicated region
      $region17: #{bottleneck_forward.1} parent=11 // pred_check
        %p209 = pneg %p81
      $region18: #{bottleneck_forward.1} parent=11 // pred_check_branch
        %211 = sbr.rel (%p209) target = $region20
      $region19: #{bottleneck_forward.1} parent=11 // pred_region
        _
      $region20: #{bottleneck_forward.1} parent=11 // pred_fallthru
        _
      // Predicated region
      $region21: #{bottleneck_forward.1} parent=11 // pred_check
        %p212 = pneg %p102
      $region22: #{bottleneck_forward.1} parent=11 // pred_check_branch
        %214 = sbr.rel (%p212) target = $region24
      $region23: #{bottleneck_forward.1} parent=11 // pred_region
        _
      $region24: #{bottleneck_forward.1} parent=11 // pred_fallthru
        _
      // Predicated region
      $region25: #{bottleneck_forward.1} parent=11 // pred_check
        %p215 = pneg %p123
      $region26: #{bottleneck_forward.1} parent=11 // pred_check_branch
        %217 = sbr.rel (%p215) target = $region28
      $region27: #{bottleneck_forward.1} parent=11 // pred_region
        _
      $region28: #{bottleneck_forward.1} parent=11 // pred_fallthru
        _
      // Predicated region
      $region29: #{bottleneck_forward.1} parent=11 // pred_check
        %p218 = pneg %p144
      $region30: #{bottleneck_forward.1} parent=11 // pred_check_branch
        %220 = sbr.rel (%p218) target = $region32
      $region31: #{bottleneck_forward.1} parent=11 // pred_region
        _
      $region32: #{bottleneck_forward.1} parent=11 // pred_fallthru
        _
      // Predicated region
      $region33: #{bottleneck_forward.1} parent=11 // pred_check
        %p221 = pneg %p165
      $region34: #{bottleneck_forward.1} parent=11 // pred_check_branch
        %223 = sbr.rel (%p221) target = $region36
      $region35: #{bottleneck_forward.1} parent=11 // pred_region
        _
      $region36: #{bottleneck_forward.1} parent=11 // pred_fallthru
        _
    $region12: #{bottleneck_forward.1} parent=5 // pred_fallthru
      _
    %p224 = scmp.lt.s32.totalorder %s13, 2
    // Predicated region
    $region37: #{bottleneck_forward.1} parent=5 // pred_check
      %p225 = pneg %p224
    $region38: #{bottleneck_forward.1} parent=5 // pred_check_branch
      %227 = sbr.rel (%p225) target = $region40
    $region39: #{bottleneck_forward.1} parent=5 // pred_region
      // Predicated region
      $region41: #{bottleneck_forward.1} parent=39 // pred_check
        %p228 = pneg %p33
      $region42: #{bottleneck_forward.1} parent=39 // pred_check_branch
        %230 = sbr.rel (%p228) target = $region44
      $region43: #{bottleneck_forward.1} parent=39 // pred_region
        %p231 = scmp.lt.s32.totalorder %s13, 1
        %s232 = scalar_select %p231, %s13, 1
        %s233 = smul.addr %s232, 32
        %s234 = smul.addr %s233, 4
        %s235 = scalar_lea.vmem %s0, %s234
      $region44: #{bottleneck_forward.1} parent=39 // pred_fallthru
        _
    $region40: #{bottleneck_forward.1} parent=5 // pred_fallthru
      _
    %p236 = scmp.le.s32.totalorder 1, %s13
    %p237 = scmp.lt.s32.totalorder %s13, 3
    %p238 = pnand %p236, %p237
    %p239 = pneg %p238
    // Predicated region
    $region45: #{bottleneck_forward.1} parent=5 // pred_check
      _
    $region46: #{bottleneck_forward.1} parent=5 // pred_check_branch
      %241 = sbr.rel (%p238) target = $region48
    $region47: #{bottleneck_forward.1} parent=5 // pred_region
      %s242 = ssub.s32 %s13, 1
      %p243 = scmp.lt.s32.totalorder %s18, 1
      %s244 = scalar_select %p243, %s18, 1
      %s245 = smul.addr %s244, 32
      %s246 = smul.addr %s245, 4
      %s247 = scalar_lea.vmem %s0, %s246
      %p248 = pneg %p39
      %p249 = pneg %p36
      %p250 = pneg %p60
      %p251 = pneg %p57
      %p252 = pneg %p81
      %p253 = pneg %p78
      %p254 = pneg %p102
      %p255 = pneg %p99
      %p256 = pneg %p123
      %p257 = pneg %p120
      %p258 = pneg %p144
      %p259 = pneg %p141
      %p260 = pneg %p165
      %p261 = pneg %p162
      %p262 = pneg %p191
      %p263 = pneg %p188
      %p264 = scmp.lt.s32.totalorder %s18, 1
      %s265 = scalar_select %p264, %s18, 1
      %s266 = smul.addr %s265, 32
      %s267 = smul.addr %s266, 8
      %s268 = scalar_lea.vmem %s7, %s267
      %p269 = scmp.lt.s32.totalorder %s18, 1
      %s270 = scalar_select %p269, %s18, 1
      %s271 = smul.addr %s270, 32
      %s272 = smul.addr %s271, 4
      %s273 = scalar_lea.vmem %s0, %s272
      %p274 = scmp.lt.s32.totalorder %s18, 1
      %s275 = scalar_select %p274, %s18, 1
      %s276 = smul.addr %s275, 32
      %s277 = smul.addr %s276, 8
      %s278 = scalar_lea.vmem %s7, %s277
      %v280 = vld [vmem:[%s273] sm:$0xf]
      %v281 = vld [vmem:[%s273 + $0x4] sm:$0xf]
      %v282 = vld [vmem:[%s273 + $0x8] sm:$0xf]
      %v283 = vld [vmem:[%s273 + $0xc] sm:$0xf]
      %v284 = vld [vmem:[%s273 + $0x10] sm:$0xf]
      %v285 = vld [vmem:[%s273 + $0x14] sm:$0xf]
      %v286 = vld [vmem:[%s273 + $0x18] sm:$0xf]
      %v287 = vld [vmem:[%s273 + $0x1c] sm:$0xf]
      %v288 = vld [vmem:[%s273 + $0x20] sm:$0xf]
      %v289 = vld [vmem:[%s273 + $0x24] sm:$0xf]
      %v290 = vld [vmem:[%s273 + $0x28] sm:$0xf]
      %v291 = vld [vmem:[%s273 + $0x2c] sm:$0xf]
      %v292 = vld [vmem:[%s273 + $0x30] sm:$0xf]
      %v293 = vld [vmem:[%s273 + $0x34] sm:$0xf]
      %v294 = vld [vmem:[%s273 + $0x38] sm:$0xf]
      %v295 = vld [vmem:[%s273 + $0x3c] sm:$0xf]
      %v296 = vld [vmem:[%s273 + $0x40] sm:$0xf]
      %v297 = vld [vmem:[%s273 + $0x44] sm:$0xf]
      %v298 = vld [vmem:[%s273 + $0x48] sm:$0xf]
      %v299 = vld [vmem:[%s273 + $0x4c] sm:$0xf]
      %v300 = vld [vmem:[%s273 + $0x50] sm:$0xf]
      %v301 = vld [vmem:[%s273 + $0x54] sm:$0xf]
      %v302 = vld [vmem:[%s273 + $0x58] sm:$0xf]
      %v303 = vld [vmem:[%s273 + $0x5c] sm:$0xf]
      %v304 = vld [vmem:[%s273 + $0x60] sm:$0xf]
      %v305 = vld [vmem:[%s273 + $0x64] sm:$0xf]
      %v306 = vld [vmem:[%s273 + $0x68] sm:$0xf]
      %v307 = vld [vmem:[%s273 + $0x6c] sm:$0xf]
      %v308 = vld [vmem:[%s273 + $0x70] sm:$0xf]
      %v309 = vld [vmem:[%s273 + $0x74] sm:$0xf]
      %v310 = vld [vmem:[%s273 + $0x78] sm:$0xf]
      %v311 = vld [vmem:[%s273 + $0x7c] sm:$0xf]
      %v312 = vunpack.c.l.bf16 %v280
      %v313 = vunpack.c.l.bf16 %v281
      %v314 = vunpack.c.l.bf16 %v282
      %v315 = vunpack.c.l.bf16 %v283
      %v316 = vunpack.c.l.bf16 %v284
      %v317 = vunpack.c.l.bf16 %v285
      %v318 = vunpack.c.l.bf16 %v286
      %v319 = vunpack.c.l.bf16 %v287
      %v320 = vunpack.c.l.bf16 %v288
      %v321 = vunpack.c.l.bf16 %v289
      %v322 = vunpack.c.l.bf16 %v290
      %v323 = vunpack.c.l.bf16 %v291
      %v324 = vunpack.c.l.bf16 %v292
      %v325 = vunpack.c.l.bf16 %v293
      %v326 = vunpack.c.l.bf16 %v294
      %v327 = vunpack.c.l.bf16 %v295
      %v328 = vunpack.c.l.bf16 %v296
      %v329 = vunpack.c.l.bf16 %v297
      %v330 = vunpack.c.l.bf16 %v298
      %v331 = vunpack.c.l.bf16 %v299
      %v332 = vunpack.c.l.bf16 %v300
      %v333 = vunpack.c.l.bf16 %v301
      %v334 = vunpack.c.l.bf16 %v302
      %v335 = vunpack.c.l.bf16 %v303
      %v336 = vunpack.c.l.bf16 %v304
      %v337 = vunpack.c.l.bf16 %v305
      %v338 = vunpack.c.l.bf16 %v306
      %v339 = vunpack.c.l.bf16 %v307
      %v340 = vunpack.c.l.bf16 %v308
      %v341 = vunpack.c.l.bf16 %v309
      %v342 = vunpack.c.l.bf16 %v310
      %v343 = vunpack.c.l.bf16 %v311
      %v344 = vld [vmem:[%s1] sm:$0x1]
      %v346 = vlaneseq
      %v347 = vshrl.u32 %v346, 7
      %v348 = vsub.s32 0, %v347
      %v349 = vrot.slane %v344, %v348
      %v351 = vmul.f32 %v312, %v349
      %v352 = vmul.f32 %v313, %v349
      %v353 = vmul.f32 %v314, %v349
      %v354 = vmul.f32 %v315, %v349
      %v355 = vmul.f32 %v316, %v349
      %v356 = vmul.f32 %v317, %v349
      %v357 = vmul.f32 %v318, %v349
      %v358 = vmul.f32 %v319, %v349
      %v359 = vmul.f32 %v320, %v349
      %v360 = vmul.f32 %v321, %v349
      %v361 = vmul.f32 %v322, %v349
      %v362 = vmul.f32 %v323, %v349
      %v363 = vmul.f32 %v324, %v349
      %v364 = vmul.f32 %v325, %v349
      %v365 = vmul.f32 %v326, %v349
      %v366 = vmul.f32 %v327, %v349
      %v367 = vmul.f32 %v328, %v349
      %v368 = vmul.f32 %v329, %v349
      %v369 = vmul.f32 %v330, %v349
      %v370 = vmul.f32 %v331, %v349
      %v371 = vmul.f32 %v332, %v349
      %v372 = vmul.f32 %v333, %v349
      %v373 = vmul.f32 %v334, %v349
      %v374 = vmul.f32 %v335, %v349
      %v375 = vmul.f32 %v336, %v349
      %v376 = vmul.f32 %v337, %v349
      %v377 = vmul.f32 %v338, %v349
      %v378 = vmul.f32 %v339, %v349
      %v379 = vmul.f32 %v340, %v349
      %v380 = vmul.f32 %v341, %v349
      %v381 = vmul.f32 %v342, %v349
      %v382 = vmul.f32 %v343, %v349
      %v383 = vld [vmem:[%s2] sm:$0x1]
      %v385 = vlaneseq
      %v386 = vshrl.u32 %v385, 7
      %v387 = vsub.s32 0, %v386
      %v388 = vrot.slane %v383, %v387
      %v390 = vadd.f32 %v351, %v388
      %v391 = vadd.f32 %v352, %v388
      %v392 = vadd.f32 %v353, %v388
      %v393 = vadd.f32 %v354, %v388
      %v394 = vadd.f32 %v355, %v388
      %v395 = vadd.f32 %v356, %v388
      %v396 = vadd.f32 %v357, %v388
      %v397 = vadd.f32 %v358, %v388
      %v398 = vadd.f32 %v359, %v388
      %v399 = vadd.f32 %v360, %v388
      %v400 = vadd.f32 %v361, %v388
      %v401 = vadd.f32 %v362, %v388
      %v402 = vadd.f32 %v363, %v388
      %v403 = vadd.f32 %v364, %v388
      %v404 = vadd.f32 %v365, %v388
      %v405 = vadd.f32 %v366, %v388
      %v406 = vadd.f32 %v367, %v388
      %v407 = vadd.f32 %v368, %v388
      %v408 = vadd.f32 %v369, %v388
      %v409 = vadd.f32 %v370, %v388
      %v410 = vadd.f32 %v371, %v388
      %v411 = vadd.f32 %v372, %v388
      %v412 = vadd.f32 %v373, %v388
      %v413 = vadd.f32 %v374, %v388
      %v414 = vadd.f32 %v375, %v388
      %v415 = vadd.f32 %v376, %v388
      %v416 = vadd.f32 %v377, %v388
      %v417 = vadd.f32 %v378, %v388
      %v418 = vadd.f32 %v379, %v388
      %v419 = vadd.f32 %v380, %v388
      %v420 = vadd.f32 %v381, %v388
      %v421 = vadd.f32 %v382, %v388
      %v422 = vmax.f32 %v390, 0.0
      %v423 = vmax.f32 %v391, 0.0
      %v424 = vmax.f32 %v392, 0.0
      %v425 = vmax.f32 %v393, 0.0
      %v426 = vmax.f32 %v394, 0.0
      %v427 = vmax.f32 %v395, 0.0
      %v428 = vmax.f32 %v396, 0.0
      %v429 = vmax.f32 %v397, 0.0
      %v430 = vmax.f32 %v398, 0.0
      %v431 = vmax.f32 %v399, 0.0
      %v432 = vmax.f32 %v400, 0.0
      %v433 = vmax.f32 %v401, 0.0
      %v434 = vmax.f32 %v402, 0.0
      %v435 = vmax.f32 %v403, 0.0
      %v436 = vmax.f32 %v404, 0.0
      %v437 = vmax.f32 %v405, 0.0
      %v438 = vmax.f32 %v406, 0.0
      %v439 = vmax.f32 %v407, 0.0
      %v440 = vmax.f32 %v408, 0.0
      %v441 = vmax.f32 %v409, 0.0
      %v442 = vmax.f32 %v410, 0.0
      %v443 = vmax.f32 %v411, 0.0
      %v444 = vmax.f32 %v412, 0.0
      %v445 = vmax.f32 %v413, 0.0
      %v446 = vmax.f32 %v414, 0.0
      %v447 = vmax.f32 %v415, 0.0
      %v448 = vmax.f32 %v416, 0.0
      %v449 = vmax.f32 %v417, 0.0
      %v450 = vmax.f32 %v418, 0.0
      %v451 = vmax.f32 %v419, 0.0
      %v452 = vmax.f32 %v420, 0.0
      %v453 = vmax.f32 %v421, 0.0
      %v454 = vpack.c.bf16 %v423, %v422
      %v455 = vpack.c.bf16 %v425, %v424
      %v456 = vpack.c.bf16 %v427, %v426
      %v457 = vpack.c.bf16 %v429, %v428
      %v458 = vpack.c.bf16 %v431, %v430
      %v459 = vpack.c.bf16 %v433, %v432
      %v460 = vpack.c.bf16 %v435, %v434
      %v461 = vpack.c.bf16 %v437, %v436
      %v462 = vpack.c.bf16 %v439, %v438
      %v463 = vpack.c.bf16 %v441, %v440
      %v464 = vpack.c.bf16 %v443, %v442
      %v465 = vpack.c.bf16 %v445, %v444
      %v466 = vpack.c.bf16 %v447, %v446
      %v467 = vpack.c.bf16 %v449, %v448
      %v468 = vpack.c.bf16 %v451, %v450
      %v469 = vpack.c.bf16 %v453, %v452
      %v470 = vld [vmem:[%s3] sm:$0x3]
      %vm471 = vcmask 31744
      %v473 = vsel %vm471, %v454, 0
      %v476 = vsel %vm471, %v455, 0
      %v479 = vsel %vm471, %v456, 0
      %v482 = vsel %vm471, %v457, 0
      %v485 = vsel %vm471, %v458, 0
      %v488 = vsel %vm471, %v459, 0
      %v491 = vsel %vm471, %v460, 0
      %v494 = vsel %vm471, %v461, 0
      %v497 = vsel %vm471, %v462, 0
      %v500 = vsel %vm471, %v463, 0
      %v503 = vsel %vm471, %v464, 0
      %v506 = vsel %vm471, %v465, 0
      %v509 = vsel %vm471, %v466, 0
      %v512 = vsel %vm471, %v467, 0
      %v515 = vsel %vm471, %v468, 0
      %v518 = vsel %vm471, %v469, 0
      %vm520 = vcmask 1041408
      %v522 = vsel %vm520, %v470, 0
      %524 = vmatprep.subr.bf16.mxu0 0
      %525 = vmatpush1.bf16.msra.mxu0 %v522
      %526 = vmatprep.subr.bf16.mxu0 0
      %527 = vmatpush1.bf16.msra.mxu0 0
      %528 = vmatprep.subr.bf16.mxu0 0
      %529 = vmatpush1.bf16.msra.mxu0 0
      %530 = vmatprep.subr.bf16.mxu0 0
      %531 = vmatpush1.bf16.msra.mxu0 0
      %532 = vmatprep.subr.bf16.mxu0 0
      %533 = vmatpush1.bf16.msra.mxu0 0
      %534 = vmatprep.subr.bf16.mxu0 0
      %535 = vmatpush1.bf16.msra.mxu0 0
      %536 = vmatprep.subr.bf16.mxu0 0
      %537 = vmatpush1.bf16.msra.mxu0 0
      %538 = vmatprep.subr.bf16.mxu0 0
      %539 = vmatpush1.bf16.msra.mxu0 0
      %540 = vmatprep.subr.bf16.mxu0 0
      %541 = vmatpush1.bf16.msra.mxu0 0
      %542 = vmatprep.subr.bf16.mxu0 0
      %543 = vmatpush1.bf16.msra.mxu0 0
      %544 = vmatprep.subr.bf16.mxu0 0
      %545 = vmatpush1.bf16.msra.mxu0 0
      %546 = vmatprep.subr.bf16.mxu0 0
      %547 = vmatpush1.bf16.msra.mxu0 0
      %548 = vmatprep.subr.bf16.mxu0 0
      %549 = vmatpush1.bf16.msra.mxu0 0
      %550 = vmatprep.subr.bf16.mxu0 0
      %551 = vmatpush1.bf16.msra.mxu0 0
      %552 = vmatprep.subr.bf16.mxu0 0
      %553 = vmatpush1.bf16.msra.mxu0 0
      %554 = vmatprep.subr.bf16.mxu0 0
      %555 = vmatpush1.bf16.msra.mxu0 0
      %556 = vmatprep.mubr.bf16.mxu0 0
      %557 = vmatmul.mubr.bf16.gmra.mrb[0].mxu0 %v473
      %v558 = vpop.f32.mrb[0].mxu0
      %v559 = vadd.f32 0.0, %v558
      %v560 = vpop.f32.mrb[0].mxu0
      %v561 = vpop.f32.mrb[0].mxu0
      %v562 = vadd.f32 0.0, %v561
      %v563 = vpop.f32.mrb[0].mxu0
      %564 = vmatprep.mubr.bf16.mxu0 0
      %565 = vmatmul.mubr.bf16.gmra.mrb[0].mxu0 %v476
      %v566 = vpop.f32.mrb[0].mxu0
      %v567 = vadd.f32 0.0, %v566
      %v568 = vpop.f32.mrb[0].mxu0
      %v569 = vpop.f32.mrb[0].mxu0
      %v570 = vadd.f32 0.0, %v569
      %v571 = vpop.f32.mrb[0].mxu0
      %572 = vmatprep.mubr.bf16.mxu0 0
      %573 = vmatmul.mubr.bf16.gmra.mrb[0].mxu0 %v479
      %v574 = vpop.f32.mrb[0].mxu0
      %v575 = vadd.f32 0.0, %v574
      %v576 = vpop.f32.mrb[0].mxu0
      %v577 = vpop.f32.mrb[0].mxu0
      %v578 = vadd.f32 0.0, %v577
      %v579 = vpop.f32.mrb[0].mxu0
      %580 = vmatprep.mubr.bf16.mxu0 0
      %581 = vmatmul.mubr.bf16.gmra.mrb[0].mxu0 %v482
      %v582 = vpop.f32.mrb[0].mxu0
      %v583 = vadd.f32 0.0, %v582
      %v584 = vpop.f32.mrb[0].mxu0
      %v585 = vpop.f32.mrb[0].mxu0
      %v586 = vadd.f32 0.0, %v585
      %v587 = vpop.f32.mrb[0].mxu0
      %588 = vmatprep.mubr.bf16.mxu0 0
      %589 = vmatmul.mubr.bf16.gmra.mrb[0].mxu0 %v485
      %v590 = vpop.f32.mrb[0].mxu0
      %v591 = vadd.f32 0.0, %v590
      %v592 = vpop.f32.mrb[0].mxu0
      %v593 = vpop.f32.mrb[0].mxu0
      %v594 = vadd.f32 0.0, %v593
      %v595 = vpop.f32.mrb[0].mxu0
      %596 = vmatprep.mubr.bf16.mxu0 0
      %597 = vmatmul.mubr.bf16.gmra.mrb[0].mxu0 %v488
      %v598 = vpop.f32.mrb[0].mxu0
      %v599 = vadd.f32 0.0, %v598
      %v600 = vpop.f32.mrb[0].mxu0
      %v601 = vpop.f32.mrb[0].mxu0
      %v602 = vadd.f32 0.0, %v601
      %v603 = vpop.f32.mrb[0].mxu0
      %604 = vmatprep.mubr.bf16.mxu0 0
      %605 = vmatmul.mubr.bf16.gmra.mrb[0].mxu0 %v491
      %v606 = vpop.f32.mrb[0].mxu0
      %v607 = vadd.f32 0.0, %v606
      %v608 = vpop.f32.mrb[0].mxu0
      %v609 = vpop.f32.mrb[0].mxu0
      %v610 = vadd.f32 0.0, %v609
      %v611 = vpop.f32.mrb[0].mxu0
      %612 = vmatprep.mubr.bf16.mxu0 0
      %613 = vmatmul.mubr.bf16.gmra.mrb[0].mxu0 %v494
      %v614 = vpop.f32.mrb[0].mxu0
      %v615 = vadd.f32 0.0, %v614
      %v616 = vpop.f32.mrb[0].mxu0
      %v617 = vpop.f32.mrb[0].mxu0
      %v618 = vadd.f32 0.0, %v617
      %v619 = vpop.f32.mrb[0].mxu0
      %620 = vmatprep.mubr.bf16.mxu0 0
      %621 = vmatmul.mubr.bf16.gmra.mrb[0].mxu0 %v497
      %v622 = vpop.f32.mrb[0].mxu0
      %v623 = vadd.f32 0.0, %v622
      %v624 = vpop.f32.mrb[0].mxu0
      %v625 = vpop.f32.mrb[0].mxu0
      %v626 = vadd.f32 0.0, %v625
      %v627 = vpop.f32.mrb[0].mxu0
      %628 = vmatprep.mubr.bf16.mxu0 0
      %629 = vmatmul.mubr.bf16.gmra.mrb[0].mxu0 %v500
      %v630 = vpop.f32.mrb[0].mxu0
      %v631 = vadd.f32 0.0, %v630
      %v632 = vpop.f32.mrb[0].mxu0
      %v633 = vpop.f32.mrb[0].mxu0
      %v634 = vadd.f32 0.0, %v633
      %v635 = vpop.f32.mrb[0].mxu0
      %636 = vmatprep.mubr.bf16.mxu0 0
      %637 = vmatmul.mubr.bf16.gmra.mrb[0].mxu0 %v503
      %v638 = vpop.f32.mrb[0].mxu0
      %v639 = vadd.f32 0.0, %v638
      %v640 = vpop.f32.mrb[0].mxu0
      %v641 = vpop.f32.mrb[0].mxu0
      %v642 = vadd.f32 0.0, %v641
      %v643 = vpop.f32.mrb[0].mxu0
      %644 = vmatprep.mubr.bf16.mxu0 0
      %645 = vmatmul.mubr.bf16.gmra.mrb[0].mxu0 %v506
      %v646 = vpop.f32.mrb[0].mxu0
      %v647 = vadd.f32 0.0, %v646
      %v648 = vpop.f32.mrb[0].mxu0
      %v649 = vpop.f32.mrb[0].mxu0
      %v650 = vadd.f32 0.0, %v649
      %v651 = vpop.f32.mrb[0].mxu0
      %652 = vmatprep.mubr.bf16.mxu0 0
      %653 = vmatmul.mubr.bf16.gmra.mrb[0].mxu0 %v509
      %v654 = vpop.f32.mrb[0].mxu0
      %v655 = vadd.f32 0.0, %v654
      %v656 = vpop.f32.mrb[0].mxu0
      %v657 = vpop.f32.mrb[0].mxu0
      %v658 = vadd.f32 0.0, %v657
      %v659 = vpop.f32.mrb[0].mxu0
      %660 = vmatprep.mubr.bf16.mxu0 0
      %661 = vmatmul.mubr.bf16.gmra.mrb[0].mxu0 %v512
      %v662 = vpop.f32.mrb[0].mxu0
      %v663 = vadd.f32 0.0, %v662
      %v664 = vpop.f32.mrb[0].mxu0
      %v665 = vpop.f32.mrb[0].mxu0
      %v666 = vadd.f32 0.0, %v665
      %v667 = vpop.f32.mrb[0].mxu0
      %668 = vmatprep.mubr.bf16.mxu0 0
      %669 = vmatmul.mubr.bf16.gmra.mrb[0].mxu0 %v515
      %v670 = vpop.f32.mrb[0].mxu0
      %v671 = vadd.f32 0.0, %v670
      %v672 = vpop.f32.mrb[0].mxu0
      %v673 = vpop.f32.mrb[0].mxu0
      %v674 = vadd.f32 0.0, %v673
      %v675 = vpop.f32.mrb[0].mxu0
      %676 = vmatprep.mubr.bf16.mxu0 0
      %677 = vmatmul.mubr.bf16.gmra.mrb[0].mxu0 %v518
      %v678 = vpop.f32.mrb[0].mxu0
      %v679 = vadd.f32 0.0, %v678
      %v680 = vpop.f32.mrb[0].mxu0
      %v681 = vpop.f32.mrb[0].mxu0
      %v682 = vadd.f32 0.0, %v681
      %v683 = vpop.f32.mrb[0].mxu0
      %684 = vdwg.mxu0
      %v685 = vld [vmem:[%s4] sm:$0x1]
      %v687 = vlaneseq
      %v688 = vshrl.u32 %v687, 7
      %v689 = vsub.s32 0, %v688
      %v690 = vrot.slane %v685, %v689
      %v692 = vmul.f32 %v559, %v690
      %v693 = vmul.f32 %v562, %v690
      %v694 = vmul.f32 %v567, %v690
      %v695 = vmul.f32 %v570, %v690
      %v696 = vmul.f32 %v575, %v690
      %v697 = vmul.f32 %v578, %v690
      %v698 = vmul.f32 %v583, %v690
      %v699 = vmul.f32 %v586, %v690
      %v700 = vmul.f32 %v591, %v690
      %v701 = vmul.f32 %v594, %v690
      %v702 = vmul.f32 %v599, %v690
      %v703 = vmul.f32 %v602, %v690
      %v704 = vmul.f32 %v607, %v690
      %v705 = vmul.f32 %v610, %v690
      %v706 = vmul.f32 %v615, %v690
      %v707 = vmul.f32 %v618, %v690
      %v708 = vmul.f32 %v623, %v690
      %v709 = vmul.f32 %v626, %v690
      %v710 = vmul.f32 %v631, %v690
      %v711 = vmul.f32 %v634, %v690
      %v712 = vmul.f32 %v639, %v690
      %v713 = vmul.f32 %v642, %v690
      %v714 = vmul.f32 %v647, %v690
      %v715 = vmul.f32 %v650, %v690
      %v716 = vmul.f32 %v655, %v690
      %v717 = vmul.f32 %v658, %v690
      %v718 = vmul.f32 %v663, %v690
      %v719 = vmul.f32 %v666, %v690
      %v720 = vmul.f32 %v671, %v690
      %v721 = vmul.f32 %v674, %v690
      %v722 = vmul.f32 %v679, %v690
      %v723 = vmul.f32 %v682, %v690
      %v724 = vld [vmem:[%s5] sm:$0x1]
      %v726 = vlaneseq
      %v727 = vshrl.u32 %v726, 7
      %v728 = vsub.s32 0, %v727
      %v729 = vrot.slane %v724, %v728
      %v731 = vadd.f32 %v692, %v729
      %v732 = vadd.f32 %v693, %v729
      %v733 = vadd.f32 %v694, %v729
      %v734 = vadd.f32 %v695, %v729
      %v735 = vadd.f32 %v696, %v729
      %v736 = vadd.f32 %v697, %v729
      %v737 = vadd.f32 %v698, %v729
      %v738 = vadd.f32 %v699, %v729
      %v739 = vadd.f32 %v700, %v729
      %v740 = vadd.f32 %v701, %v729
      %v741 = vadd.f32 %v702, %v729
      %v742 = vadd.f32 %v703, %v729
      %v743 = vadd.f32 %v704, %v729
      %v744 = vadd.f32 %v705, %v729
      %v745 = vadd.f32 %v706, %v729
      %v746 = vadd.f32 %v707, %v729
      %v747 = vadd.f32 %v708, %v729
      %v748 = vadd.f32 %v709, %v729
      %v749 = vadd.f32 %v710, %v729
      %v750 = vadd.f32 %v711, %v729
      %v751 = vadd.f32 %v712, %v729
      %v752 = vadd.f32 %v713, %v729
      %v753 = vadd.f32 %v714, %v729
      %v754 = vadd.f32 %v715, %v729
      %v755 = vadd.f32 %v716, %v729
      %v756 = vadd.f32 %v717, %v729
      %v757 = vadd.f32 %v718, %v729
      %v758 = vadd.f32 %v719, %v729
      %v759 = vadd.f32 %v720, %v729
      %v760 = vadd.f32 %v721, %v729
      %v761 = vadd.f32 %v722, %v729
      %v762 = vadd.f32 %v723, %v729
      %v763 = vmax.f32 %v731, 0.0
      %v764 = vmax.f32 %v732, 0.0
      %v765 = vmax.f32 %v733, 0.0
      %v766 = vmax.f32 %v734, 0.0
      %v767 = vmax.f32 %v735, 0.0
      %v768 = vmax.f32 %v736, 0.0
      %v769 = vmax.f32 %v737, 0.0
      %v770 = vmax.f32 %v738, 0.0
      %v771 = vmax.f32 %v739, 0.0
      %v772 = vmax.f32 %v740, 0.0
      %v773 = vmax.f32 %v741, 0.0
      %v774 = vmax.f32 %v742, 0.0
      %v775 = vmax.f32 %v743, 0.0
      %v776 = vmax.f32 %v744, 0.0
      %v777 = vmax.f32 %v745, 0.0
      %v778 = vmax.f32 %v746, 0.0
      %v779 = vmax.f32 %v747, 0.0
      %v780 = vmax.f32 %v748, 0.0
      %v781 = vmax.f32 %v749, 0.0
      %v782 = vmax.f32 %v750, 0.0
      %v783 = vmax.f32 %v751, 0.0
      %v784 = vmax.f32 %v752, 0.0
      %v785 = vmax.f32 %v753, 0.0
      %v786 = vmax.f32 %v754, 0.0
      %v787 = vmax.f32 %v755, 0.0
      %v788 = vmax.f32 %v756, 0.0
      %v789 = vmax.f32 %v757, 0.0
      %v790 = vmax.f32 %v758, 0.0
      %v791 = vmax.f32 %v759, 0.0
      %v792 = vmax.f32 %v760, 0.0
      %v793 = vmax.f32 %v761, 0.0
      %v794 = vmax.f32 %v762, 0.0
      %vm795 = vcmask 261120
      %796 = vst.msk [vmem:[#allocation2] sm:$0xff] %vm795, 0.0
      %797 = vst.msk [vmem:[#allocation2 + $0x18] sm:$0xff] %vm795, 0.0
      %vm798 = vcmask 253952
      %799 = vst.msk [vmem:[#allocation2] sm:$0x1] %vm798, 0.0
      %800 = vst.msk [vmem:[#allocation2 + $0x30] sm:$0x1] %vm798, 0.0
      %801 = vst.msk [vmem:[#allocation2 + $0x60] sm:$0x1] %vm798, 0.0
      %802 = vst.msk [vmem:[#allocation2 + $0x90] sm:$0x1] %vm798, 0.0
      %803 = vst.msk [vmem:[#allocation2 + $0xc0] sm:$0x1] %vm798, 0.0
      %804 = vst.msk [vmem:[#allocation2 + $0xf0] sm:$0x1] %vm798, 0.0
      %805 = vst.msk [vmem:[#allocation2 + $0x120] sm:$0x1] %vm798, 0.0
      %806 = vst.msk [vmem:[#allocation2 + $0x150] sm:$0x1] %vm798, 0.0
      %807 = vst.msk [vmem:[#allocation2 + $0x180] sm:$0x1] %vm798, 0.0
      %808 = vst.msk [vmem:[#allocation2 + $0x1b0] sm:$0x1] %vm798, 0.0
      %809 = vst.msk [vmem:[#allocation2 + $0x1e0] sm:$0x1] %vm798, 0.0
      %810 = vst.msk [vmem:[#allocation2 + $0x210] sm:$0x1] %vm798, 0.0
      %811 = vst.msk [vmem:[#allocation2 + $0x240] sm:$0x1] %vm798, 0.0
      %812 = vst.msk [vmem:[#allocation2 + $0x270] sm:$0x1] %vm798, 0.0
      %813 = vst.msk [vmem:[#allocation2 + $0x2a0] sm:$0x1] %vm798, 0.0
      %814 = vst.msk [vmem:[#allocation2 + $0x2d0] sm:$0x1] %vm798, 0.0
      %vm845 = vcmask 1040384
      %v846 = vrot.slane %v763, 7
      %v847 = vrot.slane %v764, 7
      %v848 = vsel %vm845, %v846, %v847
      %v849 = vrot.slane %v765, 7
      %v850 = vrot.slane %v766, 7
      %v851 = vsel %vm845, %v849, %v850
      %v852 = vrot.slane %v767, 7
      %v853 = vrot.slane %v768, 7
      %v854 = vsel %vm845, %v852, %v853
      %v855 = vrot.slane %v769, 7
      %v856 = vrot.slane %v770, 7
      %v857 = vsel %vm845, %v855, %v856
      %v858 = vrot.slane %v771, 7
      %v859 = vrot.slane %v772, 7
      %v860 = vsel %vm845, %v858, %v859
      %v861 = vrot.slane %v773, 7
      %v862 = vrot.slane %v774, 7
      %v863 = vsel %vm845, %v861, %v862
      %v864 = vrot.slane %v775, 7
      %v865 = vrot.slane %v776, 7
      %v866 = vsel %vm845, %v864, %v865
      %v867 = vrot.slane %v777, 7
      %v868 = vrot.slane %v778, 7
      %v869 = vsel %vm845, %v867, %v868
      %v870 = vrot.slane %v779, 7
      %v871 = vrot.slane %v780, 7
      %v872 = vsel %vm845, %v870, %v871
      %v873 = vrot.slane %v781, 7
      %v874 = vrot.slane %v782, 7
      %v875 = vsel %vm845, %v873, %v874
      %v876 = vrot.slane %v783, 7
      %v877 = vrot.slane %v784, 7
      %v878 = vsel %vm845, %v876, %v877
      %v879 = vrot.slane %v785, 7
      %v880 = vrot.slane %v786, 7
      %v881 = vsel %vm845, %v879, %v880
      %v882 = vrot.slane %v787, 7
      %v883 = vrot.slane %v788, 7
      %v884 = vsel %vm845, %v882, %v883
      %v885 = vrot.slane %v789, 7
      %v886 = vrot.slane %v790, 7
      %v887 = vsel %vm845, %v885, %v886
      %v888 = vrot.slane %v791, 7
      %v889 = vrot.slane %v792, 7
      %v890 = vsel %vm845, %v888, %v889
      %s921 = scalar_lea.vmem [#allocation2], 48
      %vm922 = vcmask 261121
      %923 = vst.msk [vmem:[%s921] sm:$0xfe] %vm922, %v846
      %924 = vst.msk [vmem:[%s921 + $0x18] sm:$0xff] %vm795, %v848
      %925 = vst.msk [vmem:[%s921 + $0x30] sm:$0xfe] %vm922, %v849
      %926 = vst.msk [vmem:[%s921 + $0x48] sm:$0xff] %vm795, %v851
      %927 = vst.msk [vmem:[%s921 + $0x60] sm:$0xfe] %vm922, %v852
      %928 = vst.msk [vmem:[%s921 + $0x78] sm:$0xff] %vm795, %v854
      %929 = vst.msk [vmem:[%s921 + $0x90] sm:$0xfe] %vm922, %v855
      %930 = vst.msk [vmem:[%s921 + $0xa8] sm:$0xff] %vm795, %v857
      %931 = vst.msk [vmem:[%s921 + $0xc0] sm:$0xfe] %vm922, %v858
      %932 = vst.msk [vmem:[%s921 + $0xd8] sm:$0xff] %vm795, %v860
      %933 = vst.msk [vmem:[%s921 + $0xf0] sm:$0xfe] %vm922, %v861
      %934 = vst.msk [vmem:[%s921 + $0x108] sm:$0xff] %vm795, %v863
      %935 = vst.msk [vmem:[%s921 + $0x120] sm:$0xfe] %vm922, %v864
      %936 = vst.msk [vmem:[%s921 + $0x138] sm:$0xff] %vm795, %v866
      %937 = vst.msk [vmem:[%s921 + $0x150] sm:$0xfe] %vm922, %v867
      %938 = vst.msk [vmem:[%s921 + $0x168] sm:$0xff] %vm795, %v869
      %939 = vst.msk [vmem:[%s921 + $0x180] sm:$0xfe] %vm922, %v870
      %940 = vst.msk [vmem:[%s921 + $0x198] sm:$0xff] %vm795, %v872
      %941 = vst.msk [vmem:[%s921 + $0x1b0] sm:$0xfe] %vm922, %v873
      %942 = vst.msk [vmem:[%s921 + $0x1c8] sm:$0xff] %vm795, %v875
      %943 = vst.msk [vmem:[%s921 + $0x1e0] sm:$0xfe] %vm922, %v876
      %944 = vst.msk [vmem:[%s921 + $0x1f8] sm:$0xff] %vm795, %v878
      %945 = vst.msk [vmem:[%s921 + $0x210] sm:$0xfe] %vm922, %v879
      %946 = vst.msk [vmem:[%s921 + $0x228] sm:$0xff] %vm795, %v881
      %947 = vst.msk [vmem:[%s921 + $0x240] sm:$0xfe] %vm922, %v882
      %948 = vst.msk [vmem:[%s921 + $0x258] sm:$0xff] %vm795, %v884
      %949 = vst.msk [vmem:[%s921 + $0x270] sm:$0xfe] %vm922, %v885
      %950 = vst.msk [vmem:[%s921 + $0x288] sm:$0xff] %vm795, %v887
      %951 = vst.msk [vmem:[%s921 + $0x2a0] sm:$0xfe] %vm922, %v888
      %952 = vst.msk [vmem:[%s921 + $0x2b8] sm:$0xff] %vm795, %v890
      %vm953 = vcmask 523520
      %954 = vst.msk [vmem:[#allocation2] sm:$0xff] %vm953, 0.0
      %955 = vst.msk [vmem:[#allocation2 + $0x18] sm:$0xff] %vm953, 0.0
      %956 = vrot.lane.b32.xlu0 %v763, 32
      %v957 = vpop.permute.xlu0 %956
      %958 = vrot.lane.b32.xlu0 %v764, 32
      %v959 = vpop.permute.xlu0 %958
      %960 = vrot.lane.b32.xlu0 %v765, 32
      %v961 = vpop.permute.xlu0 %960
      %962 = vrot.lane.b32.xlu0 %v766, 32
      %v963 = vpop.permute.xlu0 %962
      %964 = vrot.lane.b32.xlu0 %v767, 32
      %v965 = vpop.permute.xlu0 %964
      %966 = vrot.lane.b32.xlu0 %v768, 32
      %v967 = vpop.permute.xlu0 %966
      %968 = vrot.lane.b32.xlu0 %v769, 32
      %v969 = vpop.permute.xlu0 %968
      %970 = vrot.lane.b32.xlu0 %v770, 32
      %v971 = vpop.permute.xlu0 %970
      %972 = vrot.lane.b32.xlu0 %v771, 32
      %v973 = vpop.permute.xlu0 %972
      %974 = vrot.lane.b32.xlu0 %v772, 32
      %v975 = vpop.permute.xlu0 %974
      %976 = vrot.lane.b32.xlu0 %v773, 32
      %v977 = vpop.permute.xlu0 %976
      %978 = vrot.lane.b32.xlu0 %v774, 32
      %v979 = vpop.permute.xlu0 %978
      %980 = vrot.lane.b32.xlu0 %v775, 32
      %v981 = vpop.permute.xlu0 %980
      %982 = vrot.lane.b32.xlu0 %v776, 32
      %v983 = vpop.permute.xlu0 %982
      %984 = vrot.lane.b32.xlu0 %v777, 32
      %v985 = vpop.permute.xlu0 %984
      %986 = vrot.lane.b32.xlu0 %v778, 32
      %v987 = vpop.permute.xlu0 %986
      %988 = vrot.lane.b32.xlu0 %v779, 32
      %v989 = vpop.permute.xlu0 %988
      %990 = vrot.lane.b32.xlu0 %v780, 32
      %v991 = vpop.permute.xlu0 %990
      %992 = vrot.lane.b32.xlu0 %v781, 32
      %v993 = vpop.permute.xlu0 %992
      %994 = vrot.lane.b32.xlu0 %v782, 32
      %v995 = vpop.permute.xlu0 %994
      %996 = vrot.lane.b32.xlu0 %v783, 32
      %v997 = vpop.permute.xlu0 %996
      %998 = vrot.lane.b32.xlu0 %v784, 32
      %v999 = vpop.permute.xlu0 %998
      %1000 = vrot.lane.b32.xlu0 %v785, 32
      %v1001 = vpop.permute.xlu0 %1000
      %1002 = vrot.lane.b32.xlu0 %v786, 32
      %v1003 = vpop.permute.xlu0 %1002
      %1004 = vrot.lane.b32.xlu0 %v787, 32
      %v1005 = vpop.permute.xlu0 %1004
      %1006 = vrot.lane.b32.xlu0 %v788, 32
      %v1007 = vpop.permute.xlu0 %1006
      %1008 = vrot.lane.b32.xlu0 %v789, 32
      %v1009 = vpop.permute.xlu0 %1008
      %1010 = vrot.lane.b32.xlu0 %v790, 32
      %v1011 = vpop.permute.xlu0 %1010
      %1012 = vrot.lane.b32.xlu0 %v791, 32
      %v1013 = vpop.permute.xlu0 %1012
      %1014 = vrot.lane.b32.xlu0 %v792, 32
      %v1015 = vpop.permute.xlu0 %1014
      %1046 = vst.msk [vmem:[%s921] sm:$0xff] %vm953, %v957
      %1047 = vst.msk [vmem:[%s921 + $0x18] sm:$0xff] %vm953, %v959
      %1048 = vst.msk [vmem:[%s921 + $0x30] sm:$0xff] %vm953, %v961
      %1049 = vst.msk [vmem:[%s921 + $0x48] sm:$0xff] %vm953, %v963
      %1050 = vst.msk [vmem:[%s921 + $0x60] sm:$0xff] %vm953, %v965
      %1051 = vst.msk [vmem:[%s921 + $0x78] sm:$0xff] %vm953, %v967
      %1052 = vst.msk [vmem:[%s921 + $0x90] sm:$0xff] %vm953, %v969
      %1053 = vst.msk [vmem:[%s921 + $0xa8] sm:$0xff] %vm953, %v971
      %1054 = vst.msk [vmem:[%s921 + $0xc0] sm:$0xff] %vm953, %v973
      %1055 = vst.msk [vmem:[%s921 + $0xd8] sm:$0xff] %vm953, %v975
      %1056 = vst.msk [vmem:[%s921 + $0xf0] sm:$0xff] %vm953, %v977
      %1057 = vst.msk [vmem:[%s921 + $0x108] sm:$0xff] %vm953, %v979
      %1058 = vst.msk [vmem:[%s921 + $0x120] sm:$0xff] %vm953, %v981
      %1059 = vst.msk [vmem:[%s921 + $0x138] sm:$0xff] %vm953, %v983
      %1060 = vst.msk [vmem:[%s921 + $0x150] sm:$0xff] %vm953, %v985
      %1061 = vst.msk [vmem:[%s921 + $0x168] sm:$0xff] %vm953, %v987
      %1062 = vst.msk [vmem:[%s921 + $0x180] sm:$0xff] %vm953, %v989
      %1063 = vst.msk [vmem:[%s921 + $0x198] sm:$0xff] %vm953, %v991
      %1064 = vst.msk [vmem:[%s921 + $0x1b0] sm:$0xff] %vm953, %v993
      %1065 = vst.msk [vmem:[%s921 + $0x1c8] sm:$0xff] %vm953, %v995
      %1066 = vst.msk [vmem:[%s921 + $0x1e0] sm:$0xff] %vm953, %v997
      %1067 = vst.msk [vmem:[%s921 + $0x1f8] sm:$0xff] %vm953, %v999
      %1068 = vst.msk [vmem:[%s921 + $0x210] sm:$0xff] %vm953, %v1001
      %1069 = vst.msk [vmem:[%s921 + $0x228] sm:$0xff] %vm953, %v1003
      %1070 = vst.msk [vmem:[%s921 + $0x240] sm:$0xff] %vm953, %v1005
      %1071 = vst.msk [vmem:[%s921 + $0x258] sm:$0xff] %vm953, %v1007
      %1072 = vst.msk [vmem:[%s921 + $0x270] sm:$0xff] %vm953, %v1009
      %1073 = vst.msk [vmem:[%s921 + $0x288] sm:$0xff] %vm953, %v1011
      %1074 = vst.msk [vmem:[%s921 + $0x2a0] sm:$0xff] %vm953, %v1013
      %1075 = vst.msk [vmem:[%s921 + $0x2b8] sm:$0xff] %vm953, %v1015
      %vm1076 = vcmask 785920
      %1077 = vst.msk [vmem:[#allocation2] sm:$0xff] %vm1076, 0.0
      %1078 = vst.msk [vmem:[#allocation2 + $0x18] sm:$0xff] %vm1076, 0.0
      %vm1079 = vcmask 778752
      %1080 = vst.msk [vmem:[#allocation2 + $0x1f] sm:$0x1] %vm1079, 0.0
      %1081 = vst.msk [vmem:[#allocation2 + $0x4f] sm:$0x1] %vm1079, 0.0
      %1082 = vst.msk [vmem:[#allocation2 + $0x7f] sm:$0x1] %vm1079, 0.0
      %1083 = vst.msk [vmem:[#allocation2 + $0xaf] sm:$0x1] %vm1079, 0.0
      %1084 = vst.msk [vmem:[#allocation2 + $0xdf] sm:$0x1] %vm1079, 0.0
      %1085 = vst.msk [vmem:[#allocation2 + $0x10f] sm:$0x1] %vm1079, 0.0
      %1086 = vst.msk [vmem:[#allocation2 + $0x13f] sm:$0x1] %vm1079, 0.0
      %1087 = vst.msk [vmem:[#allocation2 + $0x16f] sm:$0x1] %vm1079, 0.0
      %1088 = vst.msk [vmem:[#allocation2 + $0x19f] sm:$0x1] %vm1079, 0.0
      %1089 = vst.msk [vmem:[#allocation2 + $0x1cf] sm:$0x1] %vm1079, 0.0
      %1090 = vst.msk [vmem:[#allocation2 + $0x1ff] sm:$0x1] %vm1079, 0.0
      %1091 = vst.msk [vmem:[#allocation2 + $0x22f] sm:$0x1] %vm1079, 0.0
      %1092 = vst.msk [vmem:[#allocation2 + $0x25f] sm:$0x1] %vm1079, 0.0
      %1093 = vst.msk [vmem:[#allocation2 + $0x28f] sm:$0x1] %vm1079, 0.0
      %1094 = vst.msk [vmem:[#allocation2 + $0x2bf] sm:$0x1] %vm1079, 0.0
      %1095 = vst.msk [vmem:[#allocation2 + $0x2ef] sm:$0x1] %vm1079, 0.0
      %vm1096 = vcmask 1046528
      %v1097 = vrot.slane %v763, 1
      %v1098 = vrot.slane %v764, 1
      %v1099 = vsel %vm1096, %v1097, %v1098
      %v1100 = vrot.slane %v765, 1
      %v1101 = vrot.slane %v766, 1
      %v1102 = vsel %vm1096, %v1100, %v1101
      %v1103 = vrot.slane %v767, 1
      %v1104 = vrot.slane %v768, 1
      %v1105 = vsel %vm1096, %v1103, %v1104
      %v1106 = vrot.slane %v769, 1
      %v1107 = vrot.slane %v770, 1
      %v1108 = vsel %vm1096, %v1106, %v1107
      %v1109 = vrot.slane %v771, 1
      %v1110 = vrot.slane %v772, 1
      %v1111 = vsel %vm1096, %v1109, %v1110
      %v1112 = vrot.slane %v773, 1
      %v1113 = vrot.slane %v774, 1
      %v1114 = vsel %vm1096, %v1112, %v1113
      %v1115 = vrot.slane %v775, 1
      %v1116 = vrot.slane %v776, 1
      %v1117 = vsel %vm1096, %v1115, %v1116
      %v1118 = vrot.slane %v777, 1
      %v1119 = vrot.slane %v778, 1
      %v1120 = vsel %vm1096, %v1118, %v1119
      %v1121 = vrot.slane %v779, 1
      %v1122 = vrot.slane %v780, 1
      %v1123 = vsel %vm1096, %v1121, %v1122
      %v1124 = vrot.slane %v781, 1
      %v1125 = vrot.slane %v782, 1
      %v1126 = vsel %vm1096, %v1124, %v1125
      %v1127 = vrot.slane %v783, 1
      %v1128 = vrot.slane %v784, 1
      %v1129 = vsel %vm1096, %v1127, %v1128
      %v1130 = vrot.slane %v785, 1
      %v1131 = vrot.slane %v786, 1
      %v1132 = vsel %vm1096, %v1130, %v1131
      %v1133 = vrot.slane %v787, 1
      %v1134 = vrot.slane %v788, 1
      %v1135 = vsel %vm1096, %v1133, %v1134
      %v1136 = vrot.slane %v789, 1
      %v1137 = vrot.slane %v790, 1
      %v1138 = vsel %vm1096, %v1136, %v1137
      %v1139 = vrot.slane %v791, 1
      %v1140 = vrot.slane %v792, 1
      %v1141 = vsel %vm1096, %v1139, %v1140
      %1142 = vrot.lane.b32.xlu0 %v1099, 64
      %v1143 = vpop.permute.xlu0 %1142
      %1144 = vrot.lane.b32.xlu0 %v1098, 64
      %v1145 = vpop.permute.xlu0 %1144
      %1146 = vrot.lane.b32.xlu0 %v1102, 64
      %v1147 = vpop.permute.xlu0 %1146
      %1148 = vrot.lane.b32.xlu0 %v1101, 64
      %v1149 = vpop.permute.xlu0 %1148
      %1150 = vrot.lane.b32.xlu0 %v1105, 64
      %v1151 = vpop.permute.xlu0 %1150
      %1152 = vrot.lane.b32.xlu0 %v1104, 64
      %v1153 = vpop.permute.xlu0 %1152
      %1154 = vrot.lane.b32.xlu0 %v1108, 64
      %v1155 = vpop.permute.xlu0 %1154
      %1156 = vrot.lane.b32.xlu0 %v1107, 64
      %v1157 = vpop.permute.xlu0 %1156
      %1158 = vrot.lane.b32.xlu0 %v1111, 64
      %v1159 = vpop.permute.xlu0 %1158
      %1160 = vrot.lane.b32.xlu0 %v1110, 64
      %v1161 = vpop.permute.xlu0 %1160
      %1162 = vrot.lane.b32.xlu0 %v1114, 64
      %v1163 = vpop.permute.xlu0 %1162
      %1164 = vrot.lane.b32.xlu0 %v1113, 64
      %v1165 = vpop.permute.xlu0 %1164
      %1166 = vrot.lane.b32.xlu0 %v1117, 64
      %v1167 = vpop.permute.xlu0 %1166
      %1168 = vrot.lane.b32.xlu0 %v1116, 64
      %v1169 = vpop.permute.xlu0 %1168
      %1170 = vrot.lane.b32.xlu0 %v1120, 64
      %v1171 = vpop.permute.xlu0 %1170
      %1172 = vrot.lane.b32.xlu0 %v1119, 64
      %v1173 = vpop.permute.xlu0 %1172
      %1174 = vrot.lane.b32.xlu0 %v1123, 64
      %v1175 = vpop.permute.xlu0 %1174
      %1176 = vrot.lane.b32.xlu0 %v1122, 64
      %v1177 = vpop.permute.xlu0 %1176
      %1178 = vrot.lane.b32.xlu0 %v1126, 64
      %v1179 = vpop.permute.xlu0 %1178
      %1180 = vrot.lane.b32.xlu0 %v1125, 64
      %v1181 = vpop.permute.xlu0 %1180
      %1182 = vrot.lane.b32.xlu0 %v1129, 64
      %v1183 = vpop.permute.xlu0 %1182
      %1184 = vrot.lane.b32.xlu0 %v1128, 64
      %v1185 = vpop.permute.xlu0 %1184
      %1186 = vrot.lane.b32.xlu0 %v1132, 64
      %v1187 = vpop.permute.xlu0 %1186
      %1188 = vrot.lane.b32.xlu0 %v1131, 64
      %v1189 = vpop.permute.xlu0 %1188
      %1190 = vrot.lane.b32.xlu0 %v1135, 64
      %v1191 = vpop.permute.xlu0 %1190
      %1192 = vrot.lane.b32.xlu0 %v1134, 64
      %v1193 = vpop.permute.xlu0 %1192
      %1194 = vrot.lane.b32.xlu0 %v1138, 64
      %v1195 = vpop.permute.xlu0 %1194
      %1196 = vrot.lane.b32.xlu0 %v1137, 64
      %v1197 = vpop.permute.xlu0 %1196
      %1198 = vrot.lane.b32.xlu0 %v1141, 64
      %v1199 = vpop.permute.xlu0 %1198
      %1200 = vrot.lane.b32.xlu0 %v1140, 64
      %v1201 = vpop.permute.xlu0 %1200
      %1232 = vst.msk [vmem:[%s921] sm:$0xff] %vm1076, %v1143
      %vm1233 = vcmask 784896
      %1234 = vst.msk [vmem:[%s921 + $0x18] sm:$0x7f] %vm1233, %v1145
      %1235 = vst.msk [vmem:[%s921 + $0x30] sm:$0xff] %vm1076, %v1147
      %1236 = vst.msk [vmem:[%s921 + $0x48] sm:$0x7f] %vm1233, %v1149
      %1237 = vst.msk [vmem:[%s921 + $0x60] sm:$0xff] %vm1076, %v1151
      %1238 = vst.msk [vmem:[%s921 + $0x78] sm:$0x7f] %vm1233, %v1153
      %1239 = vst.msk [vmem:[%s921 + $0x90] sm:$0xff] %vm1076, %v1155
      %1240 = vst.msk [vmem:[%s921 + $0xa8] sm:$0x7f] %vm1233, %v1157
      %1241 = vst.msk [vmem:[%s921 + $0xc0] sm:$0xff] %vm1076, %v1159
      %1242 = vst.msk [vmem:[%s921 + $0xd8] sm:$0x7f] %vm1233, %v1161
      %1243 = vst.msk [vmem:[%s921 + $0xf0] sm:$0xff] %vm1076, %v1163
      %1244 = vst.msk [vmem:[%s921 + $0x108] sm:$0x7f] %vm1233, %v1165
      %1245 = vst.msk [vmem:[%s921 + $0x120] sm:$0xff] %vm1076, %v1167
      %1246 = vst.msk [vmem:[%s921 + $0x138] sm:$0x7f] %vm1233, %v1169
      %1247 = vst.msk [vmem:[%s921 + $0x150] sm:$0xff] %vm1076, %v1171
      %1248 = vst.msk [vmem:[%s921 + $0x168] sm:$0x7f] %vm1233, %v1173
      %1249 = vst.msk [vmem:[%s921 + $0x180] sm:$0xff] %vm1076, %v1175
      %1250 = vst.msk [vmem:[%s921 + $0x198] sm:$0x7f] %vm1233, %v1177
      %1251 = vst.msk [vmem:[%s921 + $0x1b0] sm:$0xff] %vm1076, %v1179
      %1252 = vst.msk [vmem:[%s921 + $0x1c8] sm:$0x7f] %vm1233, %v1181
      %1253 = vst.msk [vmem:[%s921 + $0x1e0] sm:$0xff] %vm1076, %v1183
      %1254 = vst.msk [vmem:[%s921 + $0x1f8] sm:$0x7f] %vm1233, %v1185
      %1255 = vst.msk [vmem:[%s921 + $0x210] sm:$0xff] %vm1076, %v1187
      %1256 = vst.msk [vmem:[%s921 + $0x228] sm:$0x7f] %vm1233, %v1189
      %1257 = vst.msk [vmem:[%s921 + $0x240] sm:$0xff] %vm1076, %v1191
      %1258 = vst.msk [vmem:[%s921 + $0x258] sm:$0x7f] %vm1233, %v1193
      %1259 = vst.msk [vmem:[%s921 + $0x270] sm:$0xff] %vm1076, %v1195
      %1260 = vst.msk [vmem:[%s921 + $0x288] sm:$0x7f] %vm1233, %v1197
      %1261 = vst.msk [vmem:[%s921 + $0x2a0] sm:$0xff] %vm1076, %v1199
      %1262 = vst.msk [vmem:[%s921 + $0x2b8] sm:$0x7f] %vm1233, %v1201
      %vm1263 = vcmask 1041152
      %1264 = vst.msk [vmem:[#allocation2] sm:$0x1] %vm1263, 0.0
      %1265 = vst.msk [vmem:[#allocation2 + $0x30] sm:$0x1] %vm1263, 0.0
      %1266 = vst.msk [vmem:[#allocation2 + $0x60] sm:$0x1] %vm1263, 0.0
      %1267 = vst.msk [vmem:[#allocation2 + $0x90] sm:$0x1] %vm1263, 0.0
      %1268 = vst.msk [vmem:[#allocation2 + $0xc0] sm:$0x1] %vm1263, 0.0
      %1269 = vst.msk [vmem:[#allocation2 + $0xf0] sm:$0x1] %vm1263, 0.0
      %1270 = vst.msk [vmem:[#allocation2 + $0x120] sm:$0x1] %vm1263, 0.0
      %1271 = vst.msk [vmem:[#allocation2 + $0x150] sm:$0x1] %vm1263, 0.0
      %1272 = vst.msk [vmem:[#allocation2 + $0x180] sm:$0x1] %vm1263, 0.0
      %1273 = vst.msk [vmem:[#allocation2 + $0x1b0] sm:$0x1] %vm1263, 0.0
      %1274 = vst.msk [vmem:[#allocation2 + $0x1e0] sm:$0x1] %vm1263, 0.0
      %1275 = vst.msk [vmem:[#allocation2 + $0x210] sm:$0x1] %vm1263, 0.0
      %1276 = vst.msk [vmem:[#allocation2 + $0x240] sm:$0x1] %vm1263, 0.0
      %1277 = vst.msk [vmem:[#allocation2 + $0x270] sm:$0x1] %vm1263, 0.0
      %1278 = vst.msk [vmem:[#allocation2 + $0x2a0] sm:$0x1] %vm1263, 0.0
      %1279 = vst.msk [vmem:[#allocation2 + $0x2d0] sm:$0x1] %vm1263, 0.0
      %v1282 = vrot.slane %v793, 7
      %v1283 = vrot.slane %v794, 7
      %v1284 = vsel %vm845, %v1282, %v1283
      %1285 = vrot.lane.b32.xlu0 %v846, 96
      %v1286 = vpop.permute.xlu0 %1285
      %1287 = vrot.lane.b32.xlu0 %v848, 96
      %v1288 = vpop.permute.xlu0 %1287
      %1289 = vrot.lane.b32.xlu0 %v849, 96
      %v1290 = vpop.permute.xlu0 %1289
      %1291 = vrot.lane.b32.xlu0 %v851, 96
      %v1292 = vpop.permute.xlu0 %1291
      %1293 = vrot.lane.b32.xlu0 %v852, 96
      %v1294 = vpop.permute.xlu0 %1293
      %1295 = vrot.lane.b32.xlu0 %v854, 96
      %v1296 = vpop.permute.xlu0 %1295
      %1297 = vrot.lane.b32.xlu0 %v855, 96
      %v1298 = vpop.permute.xlu0 %1297
      %1299 = vrot.lane.b32.xlu0 %v857, 96
      %v1300 = vpop.permute.xlu0 %1299
      %1301 = vrot.lane.b32.xlu0 %v858, 96
      %v1302 = vpop.permute.xlu0 %1301
      %1303 = vrot.lane.b32.xlu0 %v860, 96
      %v1304 = vpop.permute.xlu0 %1303
      %1305 = vrot.lane.b32.xlu0 %v861, 96
      %v1306 = vpop.permute.xlu0 %1305
      %1307 = vrot.lane.b32.xlu0 %v863, 96
      %v1308 = vpop.permute.xlu0 %1307
      %1309 = vrot.lane.b32.xlu0 %v864, 96
      %v1310 = vpop.permute.xlu0 %1309
      %1311 = vrot.lane.b32.xlu0 %v866, 96
      %v1312 = vpop.permute.xlu0 %1311
      %1313 = vrot.lane.b32.xlu0 %v867, 96
      %v1314 = vpop.permute.xlu0 %1313
      %1315 = vrot.lane.b32.xlu0 %v869, 96
      %v1316 = vpop.permute.xlu0 %1315
      %1317 = vrot.lane.b32.xlu0 %v870, 96
      %v1318 = vpop.permute.xlu0 %1317
      %1319 = vrot.lane.b32.xlu0 %v872, 96
      %v1320 = vpop.permute.xlu0 %1319
      %1321 = vrot.lane.b32.xlu0 %v873, 96
      %v1322 = vpop.permute.xlu0 %1321
      %1323 = vrot.lane.b32.xlu0 %v875, 96
      %v1324 = vpop.permute.xlu0 %1323
      %1325 = vrot.lane.b32.xlu0 %v876, 96
      %v1326 = vpop.permute.xlu0 %1325
      %1327 = vrot.lane.b32.xlu0 %v878, 96
      %v1328 = vpop.permute.xlu0 %1327
      %1329 = vrot.lane.b32.xlu0 %v879, 96
      %v1330 = vpop.permute.xlu0 %1329
      %1331 = vrot.lane.b32.xlu0 %v881, 96
      %v1332 = vpop.permute.xlu0 %1331
      %1333 = vrot.lane.b32.xlu0 %v882, 96
      %v1334 = vpop.permute.xlu0 %1333
      %1335 = vrot.lane.b32.xlu0 %v884, 96
      %v1336 = vpop.permute.xlu0 %1335
      %1337 = vrot.lane.b32.xlu0 %v885, 96
      %v1338 = vpop.permute.xlu0 %1337
      %1339 = vrot.lane.b32.xlu0 %v887, 96
      %v1340 = vpop.permute.xlu0 %1339
      %1341 = vrot.lane.b32.xlu0 %v888, 96
      %v1342 = vpop.permute.xlu0 %1341
      %1343 = vrot.lane.b32.xlu0 %v890, 96
      %v1344 = vpop.permute.xlu0 %1343
      %1345 = vrot.lane.b32.xlu0 %v1282, 96
      %v1346 = vpop.permute.xlu0 %1345
      %1347 = vrot.lane.b32.xlu0 %v1284, 96
      %v1348 = vpop.permute.xlu0 %1347
      %vm1381 = vcmask 1048321
      %1382 = vst.msk [vmem:[#allocation2] sm:$0xfe] %vm1381, %v1286
      %vm1383 = vcmask 1048320
      %1384 = vst.msk [vmem:[#allocation2 + $0x18] sm:$0xff] %vm1383, %v1288
      %1385 = vst.msk [vmem:[#allocation2 + $0x30] sm:$0xfe] %vm1381, %v1290
      %1386 = vst.msk [vmem:[#allocation2 + $0x48] sm:$0xff] %vm1383, %v1292
      %1387 = vst.msk [vmem:[#allocation2 + $0x60] sm:$0xfe] %vm1381, %v1294
      %1388 = vst.msk [vmem:[#allocation2 + $0x78] sm:$0xff] %vm1383, %v1296
      %1389 = vst.msk [vmem:[#allocation2 + $0x90] sm:$0xfe] %vm1381, %v1298
      %1390 = vst.msk [vmem:[#allocation2 + $0xa8] sm:$0xff] %vm1383, %v1300
      %1391 = vst.msk [vmem:[#allocation2 + $0xc0] sm:$0xfe] %vm1381, %v1302
      %1392 = vst.msk [vmem:[#allocation2 + $0xd8] sm:$0xff] %vm1383, %v1304
      %1393 = vst.msk [vmem:[#allocation2 + $0xf0] sm:$0xfe] %vm1381, %v1306
      %1394 = vst.msk [vmem:[#allocation2 + $0x108] sm:$0xff] %vm1383, %v1308
      %1395 = vst.msk [vmem:[#allocation2 + $0x120] sm:$0xfe] %vm1381, %v1310
      %1396 = vst.msk [vmem:[#allocation2 + $0x138] sm:$0xff] %vm1383, %v1312
      %1397 = vst.msk [vmem:[#allocation2 + $0x150] sm:$0xfe] %vm1381, %v1314
      %1398 = vst.msk [vmem:[#allocation2 + $0x168] sm:$0xff] %vm1383, %v1316
      %1399 = vst.msk [vmem:[#allocation2 + $0x180] sm:$0xfe] %vm1381, %v1318
      %1400 = vst.msk [vmem:[#allocation2 + $0x198] sm:$0xff] %vm1383, %v1320
      %1401 = vst.msk [vmem:[#allocation2 + $0x1b0] sm:$0xfe] %vm1381, %v1322
      %1402 = vst.msk [vmem:[#allocation2 + $0x1c8] sm:$0xff] %vm1383, %v1324
      %1403 = vst.msk [vmem:[#allocation2 + $0x1e0] sm:$0xfe] %vm1381, %v1326
      %1404 = vst.msk [vmem:[#allocation2 + $0x1f8] sm:$0xff] %vm1383, %v1328
      %1405 = vst.msk [vmem:[#allocation2 + $0x210] sm:$0xfe] %vm1381, %v1330
      %1406 = vst.msk [vmem:[#allocation2 + $0x228] sm:$0xff] %vm1383, %v1332
      %1407 = vst.msk [vmem:[#allocation2 + $0x240] sm:$0xfe] %vm1381, %v1334
      %1408 = vst.msk [vmem:[#allocation2 + $0x258] sm:$0xff] %vm1383, %v1336
      %1409 = vst.msk [vmem:[#allocation2 + $0x270] sm:$0xfe] %vm1381, %v1338
      %1410 = vst.msk [vmem:[#allocation2 + $0x288] sm:$0xff] %vm1383, %v1340
      %1411 = vst.msk [vmem:[#allocation2 + $0x2a0] sm:$0xfe] %vm1381, %v1342
      %1412 = vst.msk [vmem:[#allocation2 + $0x2b8] sm:$0xff] %vm1383, %v1344
      %1413 = vst.msk [vmem:[#allocation2 + $0x2d0] sm:$0xfe] %vm1381, %v1346
      %1414 = vst.msk [vmem:[#allocation2 + $0x2e8] sm:$0xff] %vm1383, %v1348
      %1415 = vst.msk [vmem:[#allocation2 + $0x8] sm:$0xff] %vm795, %v763
      %1416 = vst.msk [vmem:[#allocation2 + $0x20] sm:$0xff] %vm795, %v764
      %1417 = vst.msk [vmem:[#allocation2 + $0x38] sm:$0xff] %vm795, %v765
      %1418 = vst.msk [vmem:[#allocation2 + $0x50] sm:$0xff] %vm795, %v766
      %1419 = vst.msk [vmem:[#allocation2 + $0x68] sm:$0xff] %vm795, %v767
      %1420 = vst.msk [vmem:[#allocation2 + $0x80] sm:$0xff] %vm795, %v768
      %1421 = vst.msk [vmem:[#allocation2 + $0x98] sm:$0xff] %vm795, %v769
      %1422 = vst.msk [vmem:[#allocation2 + $0xb0] sm:$0xff] %vm795, %v770
      %1423 = vst.msk [vmem:[#allocation2 + $0xc8] sm:$0xff] %vm795, %v771
      %1424 = vst.msk [vmem:[#allocation2 + $0xe0] sm:$0xff] %vm795, %v772
      %1425 = vst.msk [vmem:[#allocation2 + $0xf8] sm:$0xff] %vm795, %v773
      %1426 = vst.msk [vmem:[#allocation2 + $0x110] sm:$0xff] %vm795, %v774
      %1427 = vst.msk [vmem:[#allocation2 + $0x128] sm:$0xff] %vm795, %v775
      %1428 = vst.msk [vmem:[#allocation2 + $0x140] sm:$0xff] %vm795, %v776
      %1429 = vst.msk [vmem:[#allocation2 + $0x158] sm:$0xff] %vm795, %v777
      %1430 = vst.msk [vmem:[#allocation2 + $0x170] sm:$0xff] %vm795, %v778
      %1431 = vst.msk [vmem:[#allocation2 + $0x188] sm:$0xff] %vm795, %v779
      %1432 = vst.msk [vmem:[#allocation2 + $0x1a0] sm:$0xff] %vm795, %v780
      %1433 = vst.msk [vmem:[#allocation2 + $0x1b8] sm:$0xff] %vm795, %v781
      %1434 = vst.msk [vmem:[#allocation2 + $0x1d0] sm:$0xff] %vm795, %v782
      %1435 = vst.msk [vmem:[#allocation2 + $0x1e8] sm:$0xff] %vm795, %v783
      %1436 = vst.msk [vmem:[#allocation2 + $0x200] sm:$0xff] %vm795, %v784
      %1437 = vst.msk [vmem:[#allocation2 + $0x218] sm:$0xff] %vm795, %v785
      %1438 = vst.msk [vmem:[#allocation2 + $0x230] sm:$0xff] %vm795, %v786
      %1439 = vst.msk [vmem:[#allocation2 + $0x248] sm:$0xff] %vm795, %v787
      %1440 = vst.msk [vmem:[#allocation2 + $0x260] sm:$0xff] %vm795, %v788
      %1441 = vst.msk [vmem:[#allocation2 + $0x278] sm:$0xff] %vm795, %v789
      %1442 = vst.msk [vmem:[#allocation2 + $0x290] sm:$0xff] %vm795, %v790
      %1443 = vst.msk [vmem:[#allocation2 + $0x2a8] sm:$0xff] %vm795, %v791
      %1444 = vst.msk [vmem:[#allocation2 + $0x2c0] sm:$0xff] %vm795, %v792
      %1445 = vst.msk [vmem:[#allocation2 + $0x2d8] sm:$0xff] %vm795, %v793
      %1446 = vst.msk [vmem:[#allocation2 + $0x2f0] sm:$0xff] %vm795, %v794
      %vm1447 = vcmask 516352
      %1448 = vst.msk [vmem:[#allocation2 + $0x27] sm:$0x1] %vm1447, 0.0
      %1449 = vst.msk [vmem:[#allocation2 + $0x57] sm:$0x1] %vm1447, 0.0
      %1450 = vst.msk [vmem:[#allocation2 + $0x87] sm:$0x1] %vm1447, 0.0
      %1451 = vst.msk [vmem:[#allocation2 + $0xb7] sm:$0x1] %vm1447, 0.0
      %1452 = vst.msk [vmem:[#allocation2 + $0xe7] sm:$0x1] %vm1447, 0.0
      %1453 = vst.msk [vmem:[#allocation2 + $0x117] sm:$0x1] %vm1447, 0.0
      %1454 = vst.msk [vmem:[#allocation2 + $0x147] sm:$0x1] %vm1447, 0.0
      %1455 = vst.msk [vmem:[#allocation2 + $0x177] sm:$0x1] %vm1447, 0.0
      %1456 = vst.msk [vmem:[#allocation2 + $0x1a7] sm:$0x1] %vm1447, 0.0
      %1457 = vst.msk [vmem:[#allocation2 + $0x1d7] sm:$0x1] %vm1447, 0.0
      %1458 = vst.msk [vmem:[#allocation2 + $0x207] sm:$0x1] %vm1447, 0.0
      %1459 = vst.msk [vmem:[#allocation2 + $0x237] sm:$0x1] %vm1447, 0.0
      %1460 = vst.msk [vmem:[#allocation2 + $0x267] sm:$0x1] %vm1447, 0.0
      %1461 = vst.msk [vmem:[#allocation2 + $0x297] sm:$0x1] %vm1447, 0.0
      %1462 = vst.msk [vmem:[#allocation2 + $0x2c7] sm:$0x1] %vm1447, 0.0
      %1463 = vst.msk [vmem:[#allocation2 + $0x2f7] sm:$0x1] %vm1447, 0.0
      %v1464 = vrot.slane %v793, 1
      %v1465 = vrot.slane %v794, 1
      %v1466 = vsel %vm1096, %v1464, %v1465
      %1467 = vrot.lane.b32.xlu0 %v1099, 32
      %v1468 = vpop.permute.xlu0 %1467
      %1469 = vrot.lane.b32.xlu0 %v1098, 32
      %v1470 = vpop.permute.xlu0 %1469
      %1471 = vrot.lane.b32.xlu0 %v1102, 32
      %v1472 = vpop.permute.xlu0 %1471
      %1473 = vrot.lane.b32.xlu0 %v1101, 32
      %v1474 = vpop.permute.xlu0 %1473
      %1475 = vrot.lane.b32.xlu0 %v1105, 32
      %v1476 = vpop.permute.xlu0 %1475
      %1477 = vrot.lane.b32.xlu0 %v1104, 32
      %v1478 = vpop.permute.xlu0 %1477
      %1479 = vrot.lane.b32.xlu0 %v1108, 32
      %v1480 = vpop.permute.xlu0 %1479
      %1481 = vrot.lane.b32.xlu0 %v1107, 32
      %v1482 = vpop.permute.xlu0 %1481
      %1483 = vrot.lane.b32.xlu0 %v1111, 32
      %v1484 = vpop.permute.xlu0 %1483
      %1485 = vrot.lane.b32.xlu0 %v1110, 32
      %v1486 = vpop.permute.xlu0 %1485
      %1487 = vrot.lane.b32.xlu0 %v1114, 32
      %v1488 = vpop.permute.xlu0 %1487
      %1489 = vrot.lane.b32.xlu0 %v1113, 32
      %v1490 = vpop.permute.xlu0 %1489
      %1491 = vrot.lane.b32.xlu0 %v1117, 32
      %v1492 = vpop.permute.xlu0 %1491
      %1493 = vrot.lane.b32.xlu0 %v1116, 32
      %v1494 = vpop.permute.xlu0 %1493
      %1495 = vrot.lane.b32.xlu0 %v1120, 32
      %v1496 = vpop.permute.xlu0 %1495
      %1497 = vrot.lane.b32.xlu0 %v1119, 32
      %v1498 = vpop.permute.xlu0 %1497
      %1499 = vrot.lane.b32.xlu0 %v1123, 32
      %v1500 = vpop.permute.xlu0 %1499
      %1501 = vrot.lane.b32.xlu0 %v1122, 32
      %v1502 = vpop.permute.xlu0 %1501
      %1503 = vrot.lane.b32.xlu0 %v1126, 32
      %v1504 = vpop.permute.xlu0 %1503
      %1505 = vrot.lane.b32.xlu0 %v1125, 32
      %v1506 = vpop.permute.xlu0 %1505
      %1507 = vrot.lane.b32.xlu0 %v1129, 32
      %v1508 = vpop.permute.xlu0 %1507
      %1509 = vrot.lane.b32.xlu0 %v1128, 32
      %v1510 = vpop.permute.xlu0 %1509
      %1511 = vrot.lane.b32.xlu0 %v1132, 32
      %v1512 = vpop.permute.xlu0 %1511
      %1513 = vrot.lane.b32.xlu0 %v1131, 32
      %v1514 = vpop.permute.xlu0 %1513
      %1515 = vrot.lane.b32.xlu0 %v1135, 32
      %v1516 = vpop.permute.xlu0 %1515
      %1517 = vrot.lane.b32.xlu0 %v1134, 32
      %v1518 = vpop.permute.xlu0 %1517
      %1519 = vrot.lane.b32.xlu0 %v1138, 32
      %v1520 = vpop.permute.xlu0 %1519
      %1521 = vrot.lane.b32.xlu0 %v1137, 32
      %v1522 = vpop.permute.xlu0 %1521
      %1523 = vrot.lane.b32.xlu0 %v1141, 32
      %v1524 = vpop.permute.xlu0 %1523
      %1525 = vrot.lane.b32.xlu0 %v1140, 32
      %v1526 = vpop.permute.xlu0 %1525
      %1527 = vrot.lane.b32.xlu0 %v1466, 32
      %v1528 = vpop.permute.xlu0 %1527
      %1529 = vrot.lane.b32.xlu0 %v1465, 32
      %v1530 = vpop.permute.xlu0 %1529
      %1563 = vst.msk [vmem:[#allocation2 + $0x8] sm:$0xff] %vm953, %v1468
      %vm1564 = vcmask 522496
      %1565 = vst.msk [vmem:[#allocation2 + $0x20] sm:$0x7f] %vm1564, %v1470
      %1566 = vst.msk [vmem:[#allocation2 + $0x38] sm:$0xff] %vm953, %v1472
      %1567 = vst.msk [vmem:[#allocation2 + $0x50] sm:$0x7f] %vm1564, %v1474
      %1568 = vst.msk [vmem:[#allocation2 + $0x68] sm:$0xff] %vm953, %v1476
      %1569 = vst.msk [vmem:[#allocation2 + $0x80] sm:$0x7f] %vm1564, %v1478
      %1570 = vst.msk [vmem:[#allocation2 + $0x98] sm:$0xff] %vm953, %v1480
      %1571 = vst.msk [vmem:[#allocation2 + $0xb0] sm:$0x7f] %vm1564, %v1482
      %1572 = vst.msk [vmem:[#allocation2 + $0xc8] sm:$0xff] %vm953, %v1484
      %1573 = vst.msk [vmem:[#allocation2 + $0xe0] sm:$0x7f] %vm1564, %v1486
      %1574 = vst.msk [vmem:[#allocation2 + $0xf8] sm:$0xff] %vm953, %v1488
      %1575 = vst.msk [vmem:[#allocation2 + $0x110] sm:$0x7f] %vm1564, %v1490
      %1576 = vst.msk [vmem:[#allocation2 + $0x128] sm:$0xff] %vm953, %v1492
      %1577 = vst.msk [vmem:[#allocation2 + $0x140] sm:$0x7f] %vm1564, %v1494
      %1578 = vst.msk [vmem:[#allocation2 + $0x158] sm:$0xff] %vm953, %v1496
      %1579 = vst.msk [vmem:[#allocation2 + $0x170] sm:$0x7f] %vm1564, %v1498
      %1580 = vst.msk [vmem:[#allocation2 + $0x188] sm:$0xff] %vm953, %v1500
      %1581 = vst.msk [vmem:[#allocation2 + $0x1a0] sm:$0x7f] %vm1564, %v1502
      %1582 = vst.msk [vmem:[#allocation2 + $0x1b8] sm:$0xff] %vm953, %v1504
      %1583 = vst.msk [vmem:[#allocation2 + $0x1d0] sm:$0x7f] %vm1564, %v1506
      %1584 = vst.msk [vmem:[#allocation2 + $0x1e8] sm:$0xff] %vm953, %v1508
      %1585 = vst.msk [vmem:[#allocation2 + $0x200] sm:$0x7f] %vm1564, %v1510
      %1586 = vst.msk [vmem:[#allocation2 + $0x218] sm:$0xff] %vm953, %v1512
      %1587 = vst.msk [vmem:[#allocation2 + $0x230] sm:$0x7f] %vm1564, %v1514
      %1588 = vst.msk [vmem:[#allocation2 + $0x248] sm:$0xff] %vm953, %v1516
      %1589 = vst.msk [vmem:[#allocation2 + $0x260] sm:$0x7f] %vm1564, %v1518
      %1590 = vst.msk [vmem:[#allocation2 + $0x278] sm:$0xff] %vm953, %v1520
      %1591 = vst.msk [vmem:[#allocation2 + $0x290] sm:$0x7f] %vm1564, %v1522
      %1592 = vst.msk [vmem:[#allocation2 + $0x2a8] sm:$0xff] %vm953, %v1524
      %1593 = vst.msk [vmem:[#allocation2 + $0x2c0] sm:$0x7f] %vm1564, %v1526
      %1594 = vst.msk [vmem:[#allocation2 + $0x2d8] sm:$0xff] %vm953, %v1528
      %1595 = vst.msk [vmem:[#allocation2 + $0x2f0] sm:$0x7f] %vm1564, %v1530
      %s1596 = scalar_lea.vmem [#allocation2], 720
      %1597 = vst.msk [vmem:[%s1596 + $0x8] sm:$0xff] %vm1076, 0.0
      %1598 = vst.msk [vmem:[%s1596 + $0x20] sm:$0xff] %vm1076, 0.0
      %1599 = vst.msk [vmem:[#allocation2 + $0x8] sm:$0x1] %vm1079, 0.0
      %1600 = vst.msk [vmem:[#allocation2 + $0x38] sm:$0x1] %vm1079, 0.0
      %1601 = vst.msk [vmem:[#allocation2 + $0x68] sm:$0x1] %vm1079, 0.0
      %1602 = vst.msk [vmem:[#allocation2 + $0x98] sm:$0x1] %vm1079, 0.0
      %1603 = vst.msk [vmem:[#allocation2 + $0xc8] sm:$0x1] %vm1079, 0.0
      %1604 = vst.msk [vmem:[#allocation2 + $0xf8] sm:$0x1] %vm1079, 0.0
      %1605 = vst.msk [vmem:[#allocation2 + $0x128] sm:$0x1] %vm1079, 0.0
      %1606 = vst.msk [vmem:[#allocation2 + $0x158] sm:$0x1] %vm1079, 0.0
      %1607 = vst.msk [vmem:[#allocation2 + $0x188] sm:$0x1] %vm1079, 0.0
      %1608 = vst.msk [vmem:[#allocation2 + $0x1b8] sm:$0x1] %vm1079, 0.0
      %1609 = vst.msk [vmem:[#allocation2 + $0x1e8] sm:$0x1] %vm1079, 0.0
      %1610 = vst.msk [vmem:[#allocation2 + $0x218] sm:$0x1] %vm1079, 0.0
      %1611 = vst.msk [vmem:[#allocation2 + $0x248] sm:$0x1] %vm1079, 0.0
      %1612 = vst.msk [vmem:[#allocation2 + $0x278] sm:$0x1] %vm1079, 0.0
      %1613 = vst.msk [vmem:[#allocation2 + $0x2a8] sm:$0x1] %vm1079, 0.0
      %1614 = vst.msk [vmem:[#allocation2 + $0x2d8] sm:$0x1] %vm1079, 0.0
      %1615 = vrot.lane.b32.xlu0 %v849, 64
      %v1616 = vpop.permute.xlu0 %1615
      %1617 = vrot.lane.b32.xlu0 %v851, 64
      %v1618 = vpop.permute.xlu0 %1617
      %1619 = vrot.lane.b32.xlu0 %v852, 64
      %v1620 = vpop.permute.xlu0 %1619
      %1621 = vrot.lane.b32.xlu0 %v854, 64
      %v1622 = vpop.permute.xlu0 %1621
      %1623 = vrot.lane.b32.xlu0 %v855, 64
      %v1624 = vpop.permute.xlu0 %1623
      %1625 = vrot.lane.b32.xlu0 %v857, 64
      %v1626 = vpop.permute.xlu0 %1625
      %1627 = vrot.lane.b32.xlu0 %v858, 64
      %v1628 = vpop.permute.xlu0 %1627
      %1629 = vrot.lane.b32.xlu0 %v860, 64
      %v1630 = vpop.permute.xlu0 %1629
      %1631 = vrot.lane.b32.xlu0 %v861, 64
      %v1632 = vpop.permute.xlu0 %1631
      %1633 = vrot.lane.b32.xlu0 %v863, 64
      %v1634 = vpop.permute.xlu0 %1633
      %1635 = vrot.lane.b32.xlu0 %v864, 64
      %v1636 = vpop.permute.xlu0 %1635
      %1637 = vrot.lane.b32.xlu0 %v866, 64
      %v1638 = vpop.permute.xlu0 %1637
      %1639 = vrot.lane.b32.xlu0 %v867, 64
      %v1640 = vpop.permute.xlu0 %1639
      %1641 = vrot.lane.b32.xlu0 %v869, 64
      %v1642 = vpop.permute.xlu0 %1641
      %1643 = vrot.lane.b32.xlu0 %v870, 64
      %v1644 = vpop.permute.xlu0 %1643
      %1645 = vrot.lane.b32.xlu0 %v872, 64
      %v1646 = vpop.permute.xlu0 %1645
      %1647 = vrot.lane.b32.xlu0 %v873, 64
      %v1648 = vpop.permute.xlu0 %1647
      %1649 = vrot.lane.b32.xlu0 %v875, 64
      %v1650 = vpop.permute.xlu0 %1649
      %1651 = vrot.lane.b32.xlu0 %v876, 64
      %v1652 = vpop.permute.xlu0 %1651
      %1653 = vrot.lane.b32.xlu0 %v878, 64
      %v1654 = vpop.permute.xlu0 %1653
      %1655 = vrot.lane.b32.xlu0 %v879, 64
      %v1656 = vpop.permute.xlu0 %1655
      %1657 = vrot.lane.b32.xlu0 %v881, 64
      %v1658 = vpop.permute.xlu0 %1657
      %1659 = vrot.lane.b32.xlu0 %v882, 64
      %v1660 = vpop.permute.xlu0 %1659
      %1661 = vrot.lane.b32.xlu0 %v884, 64
      %v1662 = vpop.permute.xlu0 %1661
      %1663 = vrot.lane.b32.xlu0 %v885, 64
      %v1664 = vpop.permute.xlu0 %1663
      %1665 = vrot.lane.b32.xlu0 %v887, 64
      %v1666 = vpop.permute.xlu0 %1665
      %1667 = vrot.lane.b32.xlu0 %v888, 64
      %v1668 = vpop.permute.xlu0 %1667
      %1669 = vrot.lane.b32.xlu0 %v890, 64
      %v1670 = vpop.permute.xlu0 %1669
      %1671 = vrot.lane.b32.xlu0 %v1282, 64
      %v1672 = vpop.permute.xlu0 %1671
      %1673 = vrot.lane.b32.xlu0 %v1284, 64
      %v1674 = vpop.permute.xlu0 %1673
      %vm1705 = vcmask 785921
      %1706 = vst.msk [vmem:[#allocation2 + $0x8] sm:$0xfe] %vm1705, %v1616
      %1707 = vst.msk [vmem:[#allocation2 + $0x20] sm:$0xff] %vm1076, %v1618
      %1708 = vst.msk [vmem:[#allocation2 + $0x38] sm:$0xfe] %vm1705, %v1620
      %1709 = vst.msk [vmem:[#allocation2 + $0x50] sm:$0xff] %vm1076, %v1622
      %1710 = vst.msk [vmem:[#allocation2 + $0x68] sm:$0xfe] %vm1705, %v1624
      %1711 = vst.msk [vmem:[#allocation2 + $0x80] sm:$0xff] %vm1076, %v1626
      %1712 = vst.msk [vmem:[#allocation2 + $0x98] sm:$0xfe] %vm1705, %v1628
      %1713 = vst.msk [vmem:[#allocation2 + $0xb0] sm:$0xff] %vm1076, %v1630
      %1714 = vst.msk [vmem:[#allocation2 + $0xc8] sm:$0xfe] %vm1705, %v1632
      %1715 = vst.msk [vmem:[#allocation2 + $0xe0] sm:$0xff] %vm1076, %v1634
      %1716 = vst.msk [vmem:[#allocation2 + $0xf8] sm:$0xfe] %vm1705, %v1636
      %1717 = vst.msk [vmem:[#allocation2 + $0x110] sm:$0xff] %vm1076, %v1638
      %1718 = vst.msk [vmem:[#allocation2 + $0x128] sm:$0xfe] %vm1705, %v1640
      %1719 = vst.msk [vmem:[#allocation2 + $0x140] sm:$0xff] %vm1076, %v1642
      %1720 = vst.msk [vmem:[#allocation2 + $0x158] sm:$0xfe] %vm1705, %v1644
      %1721 = vst.msk [vmem:[#allocation2 + $0x170] sm:$0xff] %vm1076, %v1646
      %1722 = vst.msk [vmem:[#allocation2 + $0x188] sm:$0xfe] %vm1705, %v1648
      %1723 = vst.msk [vmem:[#allocation2 + $0x1a0] sm:$0xff] %vm1076, %v1650
      %1724 = vst.msk [vmem:[#allocation2 + $0x1b8] sm:$0xfe] %vm1705, %v1652
      %1725 = vst.msk [vmem:[#allocation2 + $0x1d0] sm:$0xff] %vm1076, %v1654
      %1726 = vst.msk [vmem:[#allocation2 + $0x1e8] sm:$0xfe] %vm1705, %v1656
      %1727 = vst.msk [vmem:[#allocation2 + $0x200] sm:$0xff] %vm1076, %v1658
      %1728 = vst.msk [vmem:[#allocation2 + $0x218] sm:$0xfe] %vm1705, %v1660
      %1729 = vst.msk [vmem:[#allocation2 + $0x230] sm:$0xff] %vm1076, %v1662
      %1730 = vst.msk [vmem:[#allocation2 + $0x248] sm:$0xfe] %vm1705, %v1664
      %1731 = vst.msk [vmem:[#allocation2 + $0x260] sm:$0xff] %vm1076, %v1666
      %1732 = vst.msk [vmem:[#allocation2 + $0x278] sm:$0xfe] %vm1705, %v1668
      %1733 = vst.msk [vmem:[#allocation2 + $0x290] sm:$0xff] %vm1076, %v1670
      %1734 = vst.msk [vmem:[#allocation2 + $0x2a8] sm:$0xfe] %vm1705, %v1672
      %1735 = vst.msk [vmem:[#allocation2 + $0x2c0] sm:$0xff] %vm1076, %v1674
      %1736 = vst.msk [vmem:[%s1596 + $0x8] sm:$0xff] %vm1383, 0.0
      %1737 = vst.msk [vmem:[%s1596 + $0x20] sm:$0xff] %vm1383, 0.0
      %1738 = vrot.lane.b32.xlu0 %v765, 96
      %v1739 = vpop.permute.xlu0 %1738
      %1740 = vrot.lane.b32.xlu0 %v766, 96
      %v1741 = vpop.permute.xlu0 %1740
      %1742 = vrot.lane.b32.xlu0 %v767, 96
      %v1743 = vpop.permute.xlu0 %1742
      %1744 = vrot.lane.b32.xlu0 %v768, 96
      %v1745 = vpop.permute.xlu0 %1744
      %1746 = vrot.lane.b32.xlu0 %v769, 96
      %v1747 = vpop.permute.xlu0 %1746
      %1748 = vrot.lane.b32.xlu0 %v770, 96
      %v1749 = vpop.permute.xlu0 %1748
      %1750 = vrot.lane.b32.xlu0 %v771, 96
      %v1751 = vpop.permute.xlu0 %1750
      %1752 = vrot.lane.b32.xlu0 %v772, 96
      %v1753 = vpop.permute.xlu0 %1752
      %1754 = vrot.lane.b32.xlu0 %v773, 96
      %v1755 = vpop.permute.xlu0 %1754
      %1756 = vrot.lane.b32.xlu0 %v774, 96
      %v1757 = vpop.permute.xlu0 %1756
      %1758 = vrot.lane.b32.xlu0 %v775, 96
      %v1759 = vpop.permute.xlu0 %1758
      %1760 = vrot.lane.b32.xlu0 %v776, 96
      %v1761 = vpop.permute.xlu0 %1760
      %1762 = vrot.lane.b32.xlu0 %v777, 96
      %v1763 = vpop.permute.xlu0 %1762
      %1764 = vrot.lane.b32.xlu0 %v778, 96
      %v1765 = vpop.permute.xlu0 %1764
      %1766 = vrot.lane.b32.xlu0 %v779, 96
      %v1767 = vpop.permute.xlu0 %1766
      %1768 = vrot.lane.b32.xlu0 %v780, 96
      %v1769 = vpop.permute.xlu0 %1768
      %1770 = vrot.lane.b32.xlu0 %v781, 96
      %v1771 = vpop.permute.xlu0 %1770
      %1772 = vrot.lane.b32.xlu0 %v782, 96
      %v1773 = vpop.permute.xlu0 %1772
      %1774 = vrot.lane.b32.xlu0 %v783, 96
      %v1775 = vpop.permute.xlu0 %1774
      %1776 = vrot.lane.b32.xlu0 %v784, 96
      %v1777 = vpop.permute.xlu0 %1776
      %1778 = vrot.lane.b32.xlu0 %v785, 96
      %v1779 = vpop.permute.xlu0 %1778
      %1780 = vrot.lane.b32.xlu0 %v786, 96
      %v1781 = vpop.permute.xlu0 %1780
      %1782 = vrot.lane.b32.xlu0 %v787, 96
      %v1783 = vpop.permute.xlu0 %1782
      %1784 = vrot.lane.b32.xlu0 %v788, 96
      %v1785 = vpop.permute.xlu0 %1784
      %1786 = vrot.lane.b32.xlu0 %v789, 96
      %v1787 = vpop.permute.xlu0 %1786
      %1788 = vrot.lane.b32.xlu0 %v790, 96
      %v1789 = vpop.permute.xlu0 %1788
      %1790 = vrot.lane.b32.xlu0 %v791, 96
      %v1791 = vpop.permute.xlu0 %1790
      %1792 = vrot.lane.b32.xlu0 %v792, 96
      %v1793 = vpop.permute.xlu0 %1792
      %1794 = vrot.lane.b32.xlu0 %v793, 96
      %v1795 = vpop.permute.xlu0 %1794
      %1796 = vrot.lane.b32.xlu0 %v794, 96
      %v1797 = vpop.permute.xlu0 %1796
      %1828 = vst.msk [vmem:[#allocation2 + $0x8] sm:$0xff] %vm1383, %v1739
      %1829 = vst.msk [vmem:[#allocation2 + $0x20] sm:$0xff] %vm1383, %v1741
      %1830 = vst.msk [vmem:[#allocation2 + $0x38] sm:$0xff] %vm1383, %v1743
      %1831 = vst.msk [vmem:[#allocation2 + $0x50] sm:$0xff] %vm1383, %v1745
      %1832 = vst.msk [vmem:[#allocation2 + $0x68] sm:$0xff] %vm1383, %v1747
      %1833 = vst.msk [vmem:[#allocation2 + $0x80] sm:$0xff] %vm1383, %v1749
      %1834 = vst.msk [vmem:[#allocation2 + $0x98] sm:$0xff] %vm1383, %v1751
      %1835 = vst.msk [vmem:[#allocation2 + $0xb0] sm:$0xff] %vm1383, %v1753
      %1836 = vst.msk [vmem:[#allocation2 + $0xc8] sm:$0xff] %vm1383, %v1755
      %1837 = vst.msk [vmem:[#allocation2 + $0xe0] sm:$0xff] %vm1383, %v1757
      %1838 = vst.msk [vmem:[#allocation2 + $0xf8] sm:$0xff] %vm1383, %v1759
      %1839 = vst.msk [vmem:[#allocation2 + $0x110] sm:$0xff] %vm1383, %v1761
      %1840 = vst.msk [vmem:[#allocation2 + $0x128] sm:$0xff] %vm1383, %v1763
      %1841 = vst.msk [vmem:[#allocation2 + $0x140] sm:$0xff] %vm1383, %v1765
      %1842 = vst.msk [vmem:[#allocation2 + $0x158] sm:$0xff] %vm1383, %v1767
      %1843 = vst.msk [vmem:[#allocation2 + $0x170] sm:$0xff] %vm1383, %v1769
      %1844 = vst.msk [vmem:[#allocation2 + $0x188] sm:$0xff] %vm1383, %v1771
      %1845 = vst.msk [vmem:[#allocation2 + $0x1a0] sm:$0xff] %vm1383, %v1773
      %1846 = vst.msk [vmem:[#allocation2 + $0x1b8] sm:$0xff] %vm1383, %v1775
      %1847 = vst.msk [vmem:[#allocation2 + $0x1d0] sm:$0xff] %vm1383, %v1777
      %1848 = vst.msk [vmem:[#allocation2 + $0x1e8] sm:$0xff] %vm1383, %v1779
      %1849 = vst.msk [vmem:[#allocation2 + $0x200] sm:$0xff] %vm1383, %v1781
      %1850 = vst.msk [vmem:[#allocation2 + $0x218] sm:$0xff] %vm1383, %v1783
      %1851 = vst.msk [vmem:[#allocation2 + $0x230] sm:$0xff] %vm1383, %v1785
      %1852 = vst.msk [vmem:[#allocation2 + $0x248] sm:$0xff] %vm1383, %v1787
      %1853 = vst.msk [vmem:[#allocation2 + $0x260] sm:$0xff] %vm1383, %v1789
      %1854 = vst.msk [vmem:[#allocation2 + $0x278] sm:$0xff] %vm1383, %v1791
      %1855 = vst.msk [vmem:[#allocation2 + $0x290] sm:$0xff] %vm1383, %v1793
      %1856 = vst.msk [vmem:[#allocation2 + $0x2a8] sm:$0xff] %vm1383, %v1795
      %1857 = vst.msk [vmem:[#allocation2 + $0x2c0] sm:$0xff] %vm1383, %v1797
      %1858 = vst.msk [vmem:[%s1596 + $0x10] sm:$0xff] %vm795, 0.0
      %1859 = vst.msk [vmem:[%s1596 + $0x28] sm:$0xff] %vm795, 0.0
      %1860 = vst.msk [vmem:[#allocation2 + $0x2f] sm:$0x1] %vm798, 0.0
      %1861 = vst.msk [vmem:[#allocation2 + $0x5f] sm:$0x1] %vm798, 0.0
      %1862 = vst.msk [vmem:[#allocation2 + $0x8f] sm:$0x1] %vm798, 0.0
      %1863 = vst.msk [vmem:[#allocation2 + $0xbf] sm:$0x1] %vm798, 0.0
      %1864 = vst.msk [vmem:[#allocation2 + $0xef] sm:$0x1] %vm798, 0.0
      %1865 = vst.msk [vmem:[#allocation2 + $0x11f] sm:$0x1] %vm798, 0.0
      %1866 = vst.msk [vmem:[#allocation2 + $0x14f] sm:$0x1] %vm798, 0.0
      %1867 = vst.msk [vmem:[#allocation2 + $0x17f] sm:$0x1] %vm798, 0.0
      %1868 = vst.msk [vmem:[#allocation2 + $0x1af] sm:$0x1] %vm798, 0.0
      %1869 = vst.msk [vmem:[#allocation2 + $0x1df] sm:$0x1] %vm798, 0.0
      %1870 = vst.msk [vmem:[#allocation2 + $0x20f] sm:$0x1] %vm798, 0.0
      %1871 = vst.msk [vmem:[#allocation2 + $0x23f] sm:$0x1] %vm798, 0.0
      %1872 = vst.msk [vmem:[#allocation2 + $0x26f] sm:$0x1] %vm798, 0.0
      %1873 = vst.msk [vmem:[#allocation2 + $0x29f] sm:$0x1] %vm798, 0.0
      %1874 = vst.msk [vmem:[#allocation2 + $0x2cf] sm:$0x1] %vm798, 0.0
      %1875 = vst.msk [vmem:[#allocation2 + $0x2ff] sm:$0x1] %vm798, 0.0
      %1906 = vst.msk [vmem:[#allocation2 + $0x10] sm:$0xff] %vm795, %v1102
      %vm1907 = vcmask 260096
      %1908 = vst.msk [vmem:[#allocation2 + $0x28] sm:$0x7f] %vm1907, %v1101
      %1909 = vst.msk [vmem:[#allocation2 + $0x40] sm:$0xff] %vm795, %v1105
      %1910 = vst.msk [vmem:[#allocation2 + $0x58] sm:$0x7f] %vm1907, %v1104
      %1911 = vst.msk [vmem:[#allocation2 + $0x70] sm:$0xff] %vm795, %v1108
      %1912 = vst.msk [vmem:[#allocation2 + $0x88] sm:$0x7f] %vm1907, %v1107
      %1913 = vst.msk [vmem:[#allocation2 + $0xa0] sm:$0xff] %vm795, %v1111
      %1914 = vst.msk [vmem:[#allocation2 + $0xb8] sm:$0x7f] %vm1907, %v1110
      %1915 = vst.msk [vmem:[#allocation2 + $0xd0] sm:$0xff] %vm795, %v1114
      %1916 = vst.msk [vmem:[#allocation2 + $0xe8] sm:$0x7f] %vm1907, %v1113
      %1917 = vst.msk [vmem:[#allocation2 + $0x100] sm:$0xff] %vm795, %v1117
      %1918 = vst.msk [vmem:[#allocation2 + $0x118] sm:$0x7f] %vm1907, %v1116
      %1919 = vst.msk [vmem:[#allocation2 + $0x130] sm:$0xff] %vm795, %v1120
      %1920 = vst.msk [vmem:[#allocation2 + $0x148] sm:$0x7f] %vm1907, %v1119
      %1921 = vst.msk [vmem:[#allocation2 + $0x160] sm:$0xff] %vm795, %v1123
      %1922 = vst.msk [vmem:[#allocation2 + $0x178] sm:$0x7f] %vm1907, %v1122
      %1923 = vst.msk [vmem:[#allocation2 + $0x190] sm:$0xff] %vm795, %v1126
      %1924 = vst.msk [vmem:[#allocation2 + $0x1a8] sm:$0x7f] %vm1907, %v1125
      %1925 = vst.msk [vmem:[#allocation2 + $0x1c0] sm:$0xff] %vm795, %v1129
      %1926 = vst.msk [vmem:[#allocation2 + $0x1d8] sm:$0x7f] %vm1907, %v1128
      %1927 = vst.msk [vmem:[#allocation2 + $0x1f0] sm:$0xff] %vm795, %v1132
      %1928 = vst.msk [vmem:[#allocation2 + $0x208] sm:$0x7f] %vm1907, %v1131
      %1929 = vst.msk [vmem:[#allocation2 + $0x220] sm:$0xff] %vm795, %v1135
      %1930 = vst.msk [vmem:[#allocation2 + $0x238] sm:$0x7f] %vm1907, %v1134
      %1931 = vst.msk [vmem:[#allocation2 + $0x250] sm:$0xff] %vm795, %v1138
      %1932 = vst.msk [vmem:[#allocation2 + $0x268] sm:$0x7f] %vm1907, %v1137
      %1933 = vst.msk [vmem:[#allocation2 + $0x280] sm:$0xff] %vm795, %v1141
      %1934 = vst.msk [vmem:[#allocation2 + $0x298] sm:$0x7f] %vm1907, %v1140
      %1935 = vst.msk [vmem:[#allocation2 + $0x2b0] sm:$0xff] %vm795, %v1466
      %1936 = vst.msk [vmem:[#allocation2 + $0x2c8] sm:$0x7f] %vm1907, %v1465
      %v1937 = vld [vmem:[#allocation2] sm:$0xff]
      %v1938 = vld [vmem:[#allocation2 + $0x8] sm:$0xff]
      %v1939 = vld [vmem:[#allocation2 + $0x10] sm:$0xff]
      %v1940 = vld [vmem:[#allocation2 + $0x18] sm:$0xff]
      %v1941 = vld [vmem:[#allocation2 + $0x20] sm:$0xff]
      %v1942 = vld [vmem:[#allocation2 + $0x28] sm:$0xff]
      %v1943 = vld [vmem:[#allocation2 + $0x30] sm:$0xff]
      %v1944 = vld [vmem:[#allocation2 + $0x38] sm:$0xff]
      %v1945 = vld [vmem:[#allocation2 + $0x40] sm:$0xff]
      %v1946 = vld [vmem:[#allocation2 + $0x48] sm:$0xff]
      %v1947 = vld [vmem:[#allocation2 + $0x50] sm:$0xff]
      %v1948 = vld [vmem:[#allocation2 + $0x58] sm:$0xff]
      %v1949 = vld [vmem:[#allocation2 + $0x60] sm:$0xff]
      %v1950 = vld [vmem:[#allocation2 + $0x68] sm:$0xff]
      %v1951 = vld [vmem:[#allocation2 + $0x70] sm:$0xff]
      %v1952 = vld [vmem:[#allocation2 + $0x78] sm:$0xff]
      %v1953 = vld [vmem:[#allocation2 + $0x80] sm:$0xff]
      %v1954 = vld [vmem:[#allocation2 + $0x88] sm:$0xff]
      %v1955 = vld [vmem:[#allocation2 + $0x90] sm:$0xff]
      %v1956 = vld [vmem:[#allocation2 + $0x98] sm:$0xff]
      %v1957 = vld [vmem:[#allocation2 + $0xa0] sm:$0xff]
      %v1958 = vld [vmem:[#allocation2 + $0xa8] sm:$0xff]
      %v1959 = vld [vmem:[#allocation2 + $0xb0] sm:$0xff]
      %v1960 = vld [vmem:[#allocation2 + $0xb8] sm:$0xff]
      %v1961 = vld [vmem:[#allocation2 + $0xc0] sm:$0xff]
      %v1962 = vld [vmem:[#allocation2 + $0xc8] sm:$0xff]
      %v1963 = vld [vmem:[#allocation2 + $0xd0] sm:$0xff]
      %v1964 = vld [vmem:[#allocation2 + $0xd8] sm:$0xff]
      %v1965 = vld [vmem:[#allocation2 + $0xe0] sm:$0xff]
      %v1966 = vld [vmem:[#allocation2 + $0xe8] sm:$0xff]
      %v1967 = vld [vmem:[#allocation2 + $0xf0] sm:$0xff]
      %v1968 = vld [vmem:[#allocation2 + $0xf8] sm:$0xff]
      %v1969 = vld [vmem:[#allocation2 + $0x100] sm:$0xff]
      %v1970 = vld [vmem:[#allocation2 + $0x108] sm:$0xff]
      %v1971 = vld [vmem:[#allocation2 + $0x110] sm:$0xff]
      %v1972 = vld [vmem:[#allocation2 + $0x118] sm:$0xff]
      %v1973 = vld [vmem:[#allocation2 + $0x120] sm:$0xff]
      %v1974 = vld [vmem:[#allocation2 + $0x128] sm:$0xff]
      %v1975 = vld [vmem:[#allocation2 + $0x130] sm:$0xff]
      %v1976 = vld [vmem:[#allocation2 + $0x138] sm:$0xff]
      %v1977 = vld [vmem:[#allocation2 + $0x140] sm:$0xff]
      %v1978 = vld [vmem:[#allocation2 + $0x148] sm:$0xff]
      %v1979 = vld [vmem:[#allocation2 + $0x150] sm:$0xff]
      %v1980 = vld [vmem:[#allocation2 + $0x158] sm:$0xff]
      %v1981 = vld [vmem:[#allocation2 + $0x160] sm:$0xff]
      %v1982 = vld [vmem:[#allocation2 + $0x168] sm:$0xff]
      %v1983 = vld [vmem:[#allocation2 + $0x170] sm:$0xff]
      %v1984 = vld [vmem:[#allocation2 + $0x178] sm:$0xff]
      %v1985 = vld [vmem:[#allocation2 + $0x180] sm:$0xff]
      %v1986 = vld [vmem:[#allocation2 + $0x188] sm:$0xff]
      %v1987 = vld [vmem:[#allocation2 + $0x190] sm:$0xff]
      %v1988 = vld [vmem:[#allocation2 + $0x198] sm:$0xff]
      %v1989 = vld [vmem:[#allocation2 + $0x1a0] sm:$0xff]
      %v1990 = vld [vmem:[#allocation2 + $0x1a8] sm:$0xff]
      %v1991 = vld [vmem:[#allocation2 + $0x1b0] sm:$0xff]
      %v1992 = vld [vmem:[#allocation2 + $0x1b8] sm:$0xff]
      %v1993 = vld [vmem:[#allocation2 + $0x1c0] sm:$0xff]
      %v1994 = vld [vmem:[#allocation2 + $0x1c8] sm:$0xff]
      %v1995 = vld [vmem:[#allocation2 + $0x1d0] sm:$0xff]
      %v1996 = vld [vmem:[#allocation2 + $0x1d8] sm:$0xff]
      %v1997 = vld [vmem:[#allocation2 + $0x1e0] sm:$0xff]
      %v1998 = vld [vmem:[#allocation2 + $0x1e8] sm:$0xff]
      %v1999 = vld [vmem:[#allocation2 + $0x1f0] sm:$0xff]
      %v2000 = vld [vmem:[#allocation2 + $0x1f8] sm:$0xff]
      %v2001 = vld [vmem:[#allocation2 + $0x200] sm:$0xff]
      %v2002 = vld [vmem:[#allocation2 + $0x208] sm:$0xff]
      %v2003 = vld [vmem:[#allocation2 + $0x210] sm:$0xff]
      %v2004 = vld [vmem:[#allocation2 + $0x218] sm:$0xff]
      %v2005 = vld [vmem:[#allocation2 + $0x220] sm:$0xff]
      %v2006 = vld [vmem:[#allocation2 + $0x228] sm:$0xff]
      %v2007 = vld [vmem:[#allocation2 + $0x230] sm:$0xff]
      %v2008 = vld [vmem:[#allocation2 + $0x238] sm:$0xff]
      %v2009 = vld [vmem:[#allocation2 + $0x240] sm:$0xff]
      %v2010 = vld [vmem:[#allocation2 + $0x248] sm:$0xff]
      %v2011 = vld [vmem:[#allocation2 + $0x250] sm:$0xff]
      %v2012 = vld [vmem:[#allocation2 + $0x258] sm:$0xff]
      %v2013 = vld [vmem:[#allocation2 + $0x260] sm:$0xff]
      %v2014 = vld [vmem:[#allocation2 + $0x268] sm:$0xff]
      %v2015 = vld [vmem:[#allocation2 + $0x270] sm:$0xff]
      %v2016 = vld [vmem:[#allocation2 + $0x278] sm:$0xff]
      %v2017 = vld [vmem:[#allocation2 + $0x280] sm:$0xff]
      %v2018 = vld [vmem:[#allocation2 + $0x288] sm:$0xff]
      %v2019 = vld [vmem:[#allocation2 + $0x290] sm:$0xff]
      %v2020 = vld [vmem:[#allocation2 + $0x298] sm:$0xff]
      %v2021 = vld [vmem:[#allocation2 + $0x2a0] sm:$0xff]
      %v2022 = vld [vmem:[#allocation2 + $0x2a8] sm:$0xff]
      %v2023 = vld [vmem:[#allocation2 + $0x2b0] sm:$0xff]
      %v2024 = vld [vmem:[#allocation2 + $0x2b8] sm:$0xff]
      %v2025 = vld [vmem:[#allocation2 + $0x2c0] sm:$0xff]
      %v2026 = vld [vmem:[#allocation2 + $0x2c8] sm:$0xff]
      %v2027 = vld [vmem:[#allocation2 + $0x2d0] sm:$0xff]
      %v2028 = vld [vmem:[#allocation2 + $0x2d8] sm:$0xff]
      %v2029 = vld [vmem:[#allocation2 + $0x2e0] sm:$0xff]
      %v2030 = vld [vmem:[#allocation2 + $0x2e8] sm:$0xff]
      %v2031 = vld [vmem:[#allocation2 + $0x2f0] sm:$0xff]
      %v2032 = vld [vmem:[#allocation2 + $0x2f8] sm:$0xff]
      %v2033 = vpack.c.bf16 %v1940, %v1937
      %v2034 = vpack.c.bf16 %v1941, %v1938
      %v2035 = vpack.c.bf16 %v1942, %v1939
      %v2036 = vpack.c.bf16 %v1946, %v1943
      %v2037 = vpack.c.bf16 %v1947, %v1944
      %v2038 = vpack.c.bf16 %v1948, %v1945
      %v2039 = vpack.c.bf16 %v1952, %v1949
      %v2040 = vpack.c.bf16 %v1953, %v1950
      %v2041 = vpack.c.bf16 %v1954, %v1951
      %v2042 = vpack.c.bf16 %v1958, %v1955
      %v2043 = vpack.c.bf16 %v1959, %v1956
      %v2044 = vpack.c.bf16 %v1960, %v1957
      %v2045 = vpack.c.bf16 %v1964, %v1961
      %v2046 = vpack.c.bf16 %v1965, %v1962
      %v2047 = vpack.c.bf16 %v1966, %v1963
      %v2048 = vpack.c.bf16 %v1970, %v1967
      %v2049 = vpack.c.bf16 %v1971, %v1968
      %v2050 = vpack.c.bf16 %v1972, %v1969
      %v2051 = vpack.c.bf16 %v1976, %v1973
      %v2052 = vpack.c.bf16 %v1977, %v1974
      %v2053 = vpack.c.bf16 %v1978, %v1975
      %v2054 = vpack.c.bf16 %v1982, %v1979
      %v2055 = vpack.c.bf16 %v1983, %v1980
      %v2056 = vpack.c.bf16 %v1984, %v1981
      %v2057 = vpack.c.bf16 %v1988, %v1985
      %v2058 = vpack.c.bf16 %v1989, %v1986
      %v2059 = vpack.c.bf16 %v1990, %v1987
      %v2060 = vpack.c.bf16 %v1994, %v1991
      %v2061 = vpack.c.bf16 %v1995, %v1992
      %v2062 = vpack.c.bf16 %v1996, %v1993
      %v2063 = vpack.c.bf16 %v2000, %v1997
      %v2064 = vpack.c.bf16 %v2001, %v1998
      %v2065 = vpack.c.bf16 %v2002, %v1999
      %v2066 = vpack.c.bf16 %v2006, %v2003
      %v2067 = vpack.c.bf16 %v2007, %v2004
      %v2068 = vpack.c.bf16 %v2008, %v2005
      %v2069 = vpack.c.bf16 %v2012, %v2009
      %v2070 = vpack.c.bf16 %v2013, %v2010
      %v2071 = vpack.c.bf16 %v2014, %v2011
      %v2072 = vpack.c.bf16 %v2018, %v2015
      %v2073 = vpack.c.bf16 %v2019, %v2016
      %v2074 = vpack.c.bf16 %v2020, %v2017
      %v2075 = vpack.c.bf16 %v2024, %v2021
      %v2076 = vpack.c.bf16 %v2025, %v2022
      %v2077 = vpack.c.bf16 %v2026, %v2023
      %v2078 = vpack.c.bf16 %v2030, %v2027
      %v2079 = vpack.c.bf16 %v2031, %v2028
      %v2080 = vpack.c.bf16 %v2032, %v2029
      %v2081 = vld [vmem:[%s6] sm:$0xf]
      %v2082 = vld [vmem:[%s6 + $0x4] sm:$0xf]
      %v2083 = vld [vmem:[%s6 + $0x8] sm:$0xf]
      %v2084 = vld [vmem:[%s6 + $0xc] sm:$0xf]
      %v2085 = vld [vmem:[%s6 + $0x10] sm:$0xf]
      %v2086 = vld [vmem:[%s6 + $0x14] sm:$0xf]
      %v2087 = vld [vmem:[%s6 + $0x18] sm:$0xf]
      %v2088 = vld [vmem:[%s6 + $0x1c] sm:$0xf]
      %v2089 = vld [vmem:[%s6 + $0x20] sm:$0xf]
      %v2090 = vld [vmem:[%s6 + $0x24] sm:$0xf]
      %v2091 = vld [vmem:[%s6 + $0x28] sm:$0xf]
      %v2092 = vld [vmem:[%s6 + $0x2c] sm:$0xf]
      %v2093 = vld [vmem:[%s6 + $0x30] sm:$0xf]
      %v2094 = vld [vmem:[%s6 + $0x34] sm:$0xf]
      %v2095 = vld [vmem:[%s6 + $0x38] sm:$0xf]
      %v2096 = vld [vmem:[%s6 + $0x3c] sm:$0xf]
      %v2097 = vld [vmem:[%s6 + $0x40] sm:$0xf]
      %v2098 = vld [vmem:[%s6 + $0x44] sm:$0xf]
      %v2099 = vld [vmem:[%s6 + $0x48] sm:$0xf]
      %v2100 = vld [vmem:[%s6 + $0x4c] sm:$0xf]
      %v2101 = vld [vmem:[%s6 + $0x50] sm:$0xf]
      %v2102 = vld [vmem:[%s6 + $0x54] sm:$0xf]
      %v2103 = vld [vmem:[%s6 + $0x58] sm:$0xf]
      %v2104 = vld [vmem:[%s6 + $0x5c] sm:$0xf]
      %v2105 = vld [vmem:[%s6 + $0x60] sm:$0xf]
      %v2106 = vld [vmem:[%s6 + $0x64] sm:$0xf]
      %v2107 = vld [vmem:[%s6 + $0x68] sm:$0xf]
      %v2108 = vld [vmem:[%s6 + $0x6c] sm:$0xf]
      %v2109 = vld [vmem:[%s6 + $0x70] sm:$0xf]
      %v2110 = vld [vmem:[%s6 + $0x74] sm:$0xf]
      %v2111 = vld [vmem:[%s6 + $0x78] sm:$0xf]
      %v2112 = vld [vmem:[%s6 + $0x7c] sm:$0xf]
      %v2113 = vld [vmem:[%s6 + $0x80] sm:$0xf]
      %v2114 = vld [vmem:[%s6 + $0x84] sm:$0xf]
      %v2115 = vld [vmem:[%s6 + $0x88] sm:$0xf]
      %v2116 = vld [vmem:[%s6 + $0x8c] sm:$0xf]
      %v2153 = vunpack.c.l.b16 %v2081
      %v2154 = vunpack.c.l.b16 %v2082
      %v2155 = vunpack.c.l.b16 %v2083
      %v2156 = vunpack.c.l.b16 %v2084
      %v2157 = vunpack.c.l.b16 %v2085
      %v2158 = vunpack.c.l.b16 %v2086
      %v2159 = vunpack.c.l.b16 %v2087
      %v2160 = vunpack.c.l.b16 %v2088
      %v2161 = vunpack.c.l.b16 %v2089
      %v2162 = vunpack.c.l.b16 %v2090
      %v2163 = vunpack.c.l.b16 %v2091
      %v2164 = vunpack.c.l.b16 %v2092
      %v2165 = vunpack.c.l.b16 %v2093
      %v2166 = vunpack.c.l.b16 %v2094
      %v2167 = vunpack.c.l.b16 %v2095
      %v2168 = vunpack.c.l.b16 %v2096
      %v2169 = vunpack.c.l.b16 %v2097
      %v2170 = vunpack.c.l.b16 %v2098
      %v2171 = vunpack.c.l.b16 %v2099
      %v2172 = vunpack.c.l.b16 %v2100
      %v2173 = vunpack.c.l.b16 %v2101
      %v2174 = vunpack.c.l.b16 %v2102
      %v2175 = vunpack.c.l.b16 %v2103
      %v2176 = vunpack.c.l.b16 %v2104
      %v2177 = vunpack.c.l.b16 %v2105
      %v2178 = vunpack.c.l.b16 %v2106
      %v2179 = vunpack.c.l.b16 %v2107
      %v2180 = vunpack.c.l.b16 %v2108
      %v2181 = vunpack.c.l.b16 %v2109
      %v2182 = vunpack.c.l.b16 %v2110
      %v2183 = vunpack.c.l.b16 %v2111
      %v2184 = vunpack.c.l.b16 %v2112
      %v2185 = vunpack.c.l.b16 %v2113
      %v2186 = vunpack.c.l.b16 %v2114
      %v2187 = vunpack.c.l.b16 %v2115
      %v2188 = vunpack.c.l.b16 %v2116
      %v2189 = vpack.c.b16 %v2154, %v2153
      %v2190 = vpack.c.b16 %v2156, %v2155
      %v2191 = vpack.c.b16 %v2158, %v2157
      %v2192 = vpack.c.b16 %v2160, %v2159
      %v2193 = vpack.c.b16 %v2162, %v2161
      %v2194 = vpack.c.b16 %v2164, %v2163
      %v2195 = vpack.c.b16 %v2166, %v2165
      %v2196 = vpack.c.b16 %v2168, %v2167
      %v2197 = vpack.c.b16 %v2170, %v2169
      %v2198 = vpack.c.b16 %v2172, %v2171
      %v2199 = vpack.c.b16 %v2174, %v2173
      %v2200 = vpack.c.b16 %v2176, %v2175
      %v2201 = vpack.c.b16 %v2178, %v2177
      %v2202 = vpack.c.b16 %v2180, %v2179
      %v2203 = vpack.c.b16 %v2182, %v2181
      %v2204 = vpack.c.b16 %v2184, %v2183
      %v2205 = vpack.c.b16 %v2186, %v2185
      %v2206 = vpack.c.b16 %v2188, %v2187
      %v2226 = vsel %vm795, %v2035, 0
      %v2229 = vsel %vm795, %v2038, 0
      %v2232 = vsel %vm795, %v2041, 0
      %v2235 = vsel %vm795, %v2044, 0
      %v2238 = vsel %vm795, %v2047, 0
      %v2241 = vsel %vm795, %v2050, 0
      %v2244 = vsel %vm795, %v2053, 0
      %v2247 = vsel %vm795, %v2056, 0
      %v2250 = vsel %vm795, %v2059, 0
      %v2253 = vsel %vm795, %v2062, 0
      %v2256 = vsel %vm795, %v2065, 0
      %v2259 = vsel %vm795, %v2068, 0
      %v2262 = vsel %vm795, %v2071, 0
      %v2265 = vsel %vm795, %v2074, 0
      %v2268 = vsel %vm795, %v2077, 0
      %v2271 = vsel %vm795, %v2080, 0
      %2273 = vmatprep.subr.bf16.mxu0 0
      %2274 = vmatpush1.bf16.msra.mxu0 %v2189
      %2275 = vmatprep.subr.bf16.mxu0 0
      %2276 = vmatpush1.bf16.msra.mxu0 %v2190
      %2277 = vmatprep.subr.bf16.mxu0 0
      %2278 = vmatpush1.bf16.msra.mxu0 %v2191
      %2279 = vmatprep.subr.bf16.mxu0 0
      %2280 = vmatpush1.bf16.msra.mxu0 %v2192
      %2281 = vmatprep.subr.bf16.mxu0 0
      %2282 = vmatpush1.bf16.msra.mxu0 %v2193
      %2283 = vmatprep.subr.bf16.mxu0 0
      %2284 = vmatpush1.bf16.msra.mxu0 %v2194
      %2285 = vmatprep.subr.bf16.mxu0 0
      %2286 = vmatpush1.bf16.msra.mxu0 %v2195
      %2287 = vmatprep.subr.bf16.mxu0 0
      %2288 = vmatpush1.bf16.msra.mxu0 %v2196
      %2289 = vmatprep.subr.bf16.mxu0 0
      %2290 = vmatpush1.bf16.msra.mxu0 %v2197
      %2291 = vmatprep.subr.bf16.mxu0 0
      %2292 = vmatpush1.bf16.msra.mxu0 %v2198
      %2293 = vmatprep.subr.bf16.mxu0 0
      %2294 = vmatpush1.bf16.msra.mxu0 %v2199
      %2295 = vmatprep.subr.bf16.mxu0 0
      %2296 = vmatpush1.bf16.msra.mxu0 %v2200
      %2297 = vmatprep.subr.bf16.mxu0 0
      %2298 = vmatpush1.bf16.msra.mxu0 %v2201
      %2299 = vmatprep.subr.bf16.mxu0 0
      %2300 = vmatpush1.bf16.msra.mxu0 %v2202
      %2301 = vmatprep.subr.bf16.mxu0 0
      %2302 = vmatpush1.bf16.msra.mxu0 %v2203
      %2303 = vmatprep.subr.bf16.mxu0 0
      %2304 = vmatpush1.bf16.msra.mxu0 %v2204
      %2305 = vmatprep.mubr.bf16.mxu0 %v2034
      %2306 = vmatmul.mubr.bf16.gmra.mrb[0].mxu0 %v2033
      %v2307 = vpop.f32.mrb[0].mxu0
      %v2308 = vadd.f32 0.0, %v2307
      %v2309 = vpop.f32.mrb[0].mxu0
      %v2310 = vpop.f32.mrb[0].mxu0
      %v2311 = vadd.f32 0.0, %v2310
      %v2312 = vpop.f32.mrb[0].mxu0
      %2313 = vmatprep.mubr.bf16.mxu0 %v2037
      %2314 = vmatmul.mubr.bf16.gmra.mrb[0].mxu0 %v2036
      %v2315 = vpop.f32.mrb[0].mxu0
      %v2316 = vadd.f32 0.0, %v2315
      %v2317 = vpop.f32.mrb[0].mxu0
      %v2318 = vpop.f32.mrb[0].mxu0
      %v2319 = vadd.f32 0.0, %v2318
      %v2320 = vpop.f32.mrb[0].mxu0
      %2321 = vmatprep.mubr.bf16.mxu0 %v2040
      %2322 = vmatmul.mubr.bf16.gmra.mrb[0].mxu0 %v2039
      %v2323 = vpop.f32.mrb[0].mxu0
      %v2324 = vadd.f32 0.0, %v2323
      %v2325 = vpop.f32.mrb[0].mxu0
      %v2326 = vpop.f32.mrb[0].mxu0
      %v2327 = vadd.f32 0.0, %v2326
      %v2328 = vpop.f32.mrb[0].mxu0
      %2329 = vmatprep.mubr.bf16.mxu0 %v2043
      %2330 = vmatmul.mubr.bf16.gmra.mrb[0].mxu0 %v2042
      %v2331 = vpop.f32.mrb[0].mxu0
      %v2332 = vadd.f32 0.0, %v2331
      %v2333 = vpop.f32.mrb[0].mxu0
      %v2334 = vpop.f32.mrb[0].mxu0
      %v2335 = vadd.f32 0.0, %v2334
      %v2336 = vpop.f32.mrb[0].mxu0
      %2337 = vmatprep.mubr.bf16.mxu0 %v2046
      %2338 = vmatmul.mubr.bf16.gmra.mrb[0].mxu0 %v2045
      %v2339 = vpop.f32.mrb[0].mxu0
      %v2340 = vadd.f32 0.0, %v2339
      %v2341 = vpop.f32.mrb[0].mxu0
      %v2342 = vpop.f32.mrb[0].mxu0
      %v2343 = vadd.f32 0.0, %v2342
      %v2344 = vpop.f32.mrb[0].mxu0
      %2345 = vmatprep.mubr.bf16.mxu0 %v2049
      %2346 = vmatmul.mubr.bf16.gmra.mrb[0].mxu0 %v2048
      %v2347 = vpop.f32.mrb[0].mxu0
      %v2348 = vadd.f32 0.0, %v2347
      %v2349 = vpop.f32.mrb[0].mxu0
      %v2350 = vpop.f32.mrb[0].mxu0
      %v2351 = vadd.f32 0.0, %v2350
      %v2352 = vpop.f32.mrb[0].mxu0
      %2353 = vmatprep.mubr.bf16.mxu0 %v2052
      %2354 = vmatmul.mubr.bf16.gmra.mrb[0].mxu0 %v2051
      %v2355 = vpop.f32.mrb[0].mxu0
      %v2356 = vadd.f32 0.0, %v2355
      %v2357 = vpop.f32.mrb[0].mxu0
      %v2358 = vpop.f32.mrb[0].mxu0
      %v2359 = vadd.f32 0.0, %v2358
      %v2360 = vpop.f32.mrb[0].mxu0
      %2361 = vmatprep.mubr.bf16.mxu0 %v2055
      %2362 = vmatmul.mubr.bf16.gmra.mrb[0].mxu0 %v2054
      %v2363 = vpop.f32.mrb[0].mxu0
      %v2364 = vadd.f32 0.0, %v2363
      %v2365 = vpop.f32.mrb[0].mxu0
      %v2366 = vpop.f32.mrb[0].mxu0
      %v2367 = vadd.f32 0.0, %v2366
      %v2368 = vpop.f32.mrb[0].mxu0
      %2369 = vmatprep.mubr.bf16.mxu0 %v2058
      %2370 = vmatmul.mubr.bf16.gmra.mrb[0].mxu0 %v2057
      %v2371 = vpop.f32.mrb[0].mxu0
      %v2372 = vadd.f32 0.0, %v2371
      %v2373 = vpop.f32.mrb[0].mxu0
      %v2374 = vpop.f32.mrb[0].mxu0
      %v2375 = vadd.f32 0.0, %v2374
      %v2376 = vpop.f32.mrb[0].mxu0
      %2377 = vmatprep.mubr.bf16.mxu0 %v2061
      %2378 = vmatmul.mubr.bf16.gmra.mrb[0].mxu0 %v2060
      %v2379 = vpop.f32.mrb[0].mxu0
      %v2380 = vadd.f32 0.0, %v2379
      %v2381 = vpop.f32.mrb[0].mxu0
      %v2382 = vpop.f32.mrb[0].mxu0
      %v2383 = vadd.f32 0.0, %v2382
      %v2384 = vpop.f32.mrb[0].mxu0
      %2385 = vmatprep.mubr.bf16.mxu0 %v2064
      %2386 = vmatmul.mubr.bf16.gmra.mrb[0].mxu0 %v2063
      %v2387 = vpop.f32.mrb[0].mxu0
      %v2388 = vadd.f32 0.0, %v2387
      %v2389 = vpop.f32.mrb[0].mxu0
      %v2390 = vpop.f32.mrb[0].mxu0
      %v2391 = vadd.f32 0.0, %v2390
      %v2392 = vpop.f32.mrb[0].mxu0
      %2393 = vmatprep.mubr.bf16.mxu0 %v2067
      %2394 = vmatmul.mubr.bf16.gmra.mrb[0].mxu0 %v2066
      %v2395 = vpop.f32.mrb[0].mxu0
      %v2396 = vadd.f32 0.0, %v2395
      %v2397 = vpop.f32.mrb[0].mxu0
      %v2398 = vpop.f32.mrb[0].mxu0
      %v2399 = vadd.f32 0.0, %v2398
      %v2400 = vpop.f32.mrb[0].mxu0
      %2401 = vmatprep.mubr.bf16.mxu0 %v2070
      %2402 = vmatmul.mubr.bf16.gmra.mrb[0].mxu0 %v2069
      %v2403 = vpop.f32.mrb[0].mxu0
      %v2404 = vadd.f32 0.0, %v2403
      %v2405 = vpop.f32.mrb[0].mxu0
      %v2406 = vpop.f32.mrb[0].mxu0
      %v2407 = vadd.f32 0.0, %v2406
      %v2408 = vpop.f32.mrb[0].mxu0
      %2409 = vmatprep.mubr.bf16.mxu0 %v2073
      %2410 = vmatmul.mubr.bf16.gmra.mrb[0].mxu0 %v2072
      %v2411 = vpop.f32.mrb[0].mxu0
      %v2412 = vadd.f32 0.0, %v2411
      %v2413 = vpop.f32.mrb[0].mxu0
      %v2414 = vpop.f32.mrb[0].mxu0
      %v2415 = vadd.f32 0.0, %v2414
      %v2416 = vpop.f32.mrb[0].mxu0
      %2417 = vmatprep.mubr.bf16.mxu0 %v2076
      %2418 = vmatmul.mubr.bf16.gmra.mrb[0].mxu0 %v2075
      %v2419 = vpop.f32.mrb[0].mxu0
      %v2420 = vadd.f32 0.0, %v2419
      %v2421 = vpop.f32.mrb[0].mxu0
      %v2422 = vpop.f32.mrb[0].mxu0
      %v2423 = vadd.f32 0.0, %v2422
      %v2424 = vpop.f32.mrb[0].mxu0
      %2425 = vmatprep.mubr.bf16.mxu0 %v2079
      %2426 = vmatmul.mubr.bf16.gmra.mrb[0].mxu0 %v2078
      %v2427 = vpop.f32.mrb[0].mxu0
      %v2428 = vadd.f32 0.0, %v2427
      %v2429 = vpop.f32.mrb[0].mxu0
      %v2430 = vpop.f32.mrb[0].mxu0
      %v2431 = vadd.f32 0.0, %v2430
      %v2432 = vpop.f32.mrb[0].mxu0
      %2433 = vdwg.mxu0
      %2434 = vmatprep.subr.bf16.mxu0 0
      %2435 = vmatpush1.bf16.msra.mxu0 %v2205
      %2436 = vmatprep.subr.bf16.mxu0 0
      %2437 = vmatpush1.bf16.msra.mxu0 %v2206
      %2438 = vmatprep.subr.bf16.mxu0 0
      %2439 = vmatpush1.bf16.msra.mxu0 0
      %2440 = vmatprep.subr.bf16.mxu0 0
      %2441 = vmatpush1.bf16.msra.mxu0 0
      %2442 = vmatprep.subr.bf16.mxu0 0
      %2443 = vmatpush1.bf16.msra.mxu0 0
      %2444 = vmatprep.subr.bf16.mxu0 0
      %2445 = vmatpush1.bf16.msra.mxu0 0
      %2446 = vmatprep.subr.bf16.mxu0 0
      %2447 = vmatpush1.bf16.msra.mxu0 0
      %2448 = vmatprep.subr.bf16.mxu0 0
      %2449 = vmatpush1.bf16.msra.mxu0 0
      %2450 = vmatprep.subr.bf16.mxu0 0
      %2451 = vmatpush1.bf16.msra.mxu0 0
      %2452 = vmatprep.subr.bf16.mxu0 0
      %2453 = vmatpush1.bf16.msra.mxu0 0
      %2454 = vmatprep.subr.bf16.mxu0 0
      %2455 = vmatpush1.bf16.msra.mxu0 0
      %2456 = vmatprep.subr.bf16.mxu0 0
      %2457 = vmatpush1.bf16.msra.mxu0 0
      %2458 = vmatprep.subr.bf16.mxu0 0
      %2459 = vmatpush1.bf16.msra.mxu0 0
      %2460 = vmatprep.subr.bf16.mxu0 0
      %2461 = vmatpush1.bf16.msra.mxu0 0
      %2462 = vmatprep.subr.bf16.mxu0 0
      %2463 = vmatpush1.bf16.msra.mxu0 0
      %2464 = vmatprep.subr.bf16.mxu0 0
      %2465 = vmatpush1.bf16.msra.mxu0 0
      %2466 = vmatprep.mubr.bf16.mxu0 0
      %2467 = vmatmul.mubr.bf16.gmra.mrb[0].mxu0 %v2226
      %v2468 = vpop.f32.mrb[0].mxu0
      %v2469 = vadd.f32 %v2308, %v2468
      %v2470 = vpop.f32.mrb[0].mxu0
      %v2471 = vpop.f32.mrb[0].mxu0
      %v2472 = vadd.f32 %v2311, %v2471
      %v2473 = vpop.f32.mrb[0].mxu0
      %2474 = vmatprep.mubr.bf16.mxu0 0
      %2475 = vmatmul.mubr.bf16.gmra.mrb[0].mxu0 %v2229
      %v2476 = vpop.f32.mrb[0].mxu0
      %v2477 = vadd.f32 %v2316, %v2476
      %v2478 = vpop.f32.mrb[0].mxu0
      %v2479 = vpop.f32.mrb[0].mxu0
      %v2480 = vadd.f32 %v2319, %v2479
      %v2481 = vpop.f32.mrb[0].mxu0
      %2482 = vmatprep.mubr.bf16.mxu0 0
      %2483 = vmatmul.mubr.bf16.gmra.mrb[0].mxu0 %v2232
      %v2484 = vpop.f32.mrb[0].mxu0
      %v2485 = vadd.f32 %v2324, %v2484
      %v2486 = vpop.f32.mrb[0].mxu0
      %v2487 = vpop.f32.mrb[0].mxu0
      %v2488 = vadd.f32 %v2327, %v2487
      %v2489 = vpop.f32.mrb[0].mxu0
      %2490 = vmatprep.mubr.bf16.mxu0 0
      %2491 = vmatmul.mubr.bf16.gmra.mrb[0].mxu0 %v2235
      %v2492 = vpop.f32.mrb[0].mxu0
      %v2493 = vadd.f32 %v2332, %v2492
      %v2494 = vpop.f32.mrb[0].mxu0
      %v2495 = vpop.f32.mrb[0].mxu0
      %v2496 = vadd.f32 %v2335, %v2495
      %v2497 = vpop.f32.mrb[0].mxu0
      %2498 = vmatprep.mubr.bf16.mxu0 0
      %2499 = vmatmul.mubr.bf16.gmra.mrb[0].mxu0 %v2238
      %v2500 = vpop.f32.mrb[0].mxu0
      %v2501 = vadd.f32 %v2340, %v2500
      %v2502 = vpop.f32.mrb[0].mxu0
      %v2503 = vpop.f32.mrb[0].mxu0
      %v2504 = vadd.f32 %v2343, %v2503
      %v2505 = vpop.f32.mrb[0].mxu0
      %2506 = vmatprep.mubr.bf16.mxu0 0
      %2507 = vmatmul.mubr.bf16.gmra.mrb[0].mxu0 %v2241
      %v2508 = vpop.f32.mrb[0].mxu0
      %v2509 = vadd.f32 %v2348, %v2508
      %v2510 = vpop.f32.mrb[0].mxu0
      %v2511 = vpop.f32.mrb[0].mxu0
      %v2512 = vadd.f32 %v2351, %v2511
      %v2513 = vpop.f32.mrb[0].mxu0
      %2514 = vmatprep.mubr.bf16.mxu0 0
      %2515 = vmatmul.mubr.bf16.gmra.mrb[0].mxu0 %v2244
      %v2516 = vpop.f32.mrb[0].mxu0
      %v2517 = vadd.f32 %v2356, %v2516
      %v2518 = vpop.f32.mrb[0].mxu0
      %v2519 = vpop.f32.mrb[0].mxu0
      %v2520 = vadd.f32 %v2359, %v2519
      %v2521 = vpop.f32.mrb[0].mxu0
      %2522 = vmatprep.mubr.bf16.mxu0 0
      %2523 = vmatmul.mubr.bf16.gmra.mrb[0].mxu0 %v2247
      %v2524 = vpop.f32.mrb[0].mxu0
      %v2525 = vadd.f32 %v2364, %v2524
      %v2526 = vpop.f32.mrb[0].mxu0
      %v2527 = vpop.f32.mrb[0].mxu0
      %v2528 = vadd.f32 %v2367, %v2527
      %v2529 = vpop.f32.mrb[0].mxu0
      %2530 = vmatprep.mubr.bf16.mxu0 0
      %2531 = vmatmul.mubr.bf16.gmra.mrb[0].mxu0 %v2250
      %v2532 = vpop.f32.mrb[0].mxu0
      %v2533 = vadd.f32 %v2372, %v2532
      %v2534 = vpop.f32.mrb[0].mxu0
      %v2535 = vpop.f32.mrb[0].mxu0
      %v2536 = vadd.f32 %v2375, %v2535
      %v2537 = vpop.f32.mrb[0].mxu0
      %2538 = vmatprep.mubr.bf16.mxu0 0
      %2539 = vmatmul.mubr.bf16.gmra.mrb[0].mxu0 %v2253
      %v2540 = vpop.f32.mrb[0].mxu0
      %v2541 = vadd.f32 %v2380, %v2540
      %v2542 = vpop.f32.mrb[0].mxu0
      %v2543 = vpop.f32.mrb[0].mxu0
      %v2544 = vadd.f32 %v2383, %v2543
      %v2545 = vpop.f32.mrb[0].mxu0
      %2546 = vmatprep.mubr.bf16.mxu0 0
      %2547 = vmatmul.mubr.bf16.gmra.mrb[0].mxu0 %v2256
      %v2548 = vpop.f32.mrb[0].mxu0
      %v2549 = vadd.f32 %v2388, %v2548
      %v2550 = vpop.f32.mrb[0].mxu0
      %v2551 = vpop.f32.mrb[0].mxu0
      %v2552 = vadd.f32 %v2391, %v2551
      %v2553 = vpop.f32.mrb[0].mxu0
      %2554 = vmatprep.mubr.bf16.mxu0 0
      %2555 = vmatmul.mubr.bf16.gmra.mrb[0].mxu0 %v2259
      %v2556 = vpop.f32.mrb[0].mxu0
      %v2557 = vadd.f32 %v2396, %v2556
      %v2558 = vpop.f32.mrb[0].mxu0
      %v2559 = vpop.f32.mrb[0].mxu0
      %v2560 = vadd.f32 %v2399, %v2559
      %v2561 = vpop.f32.mrb[0].mxu0
      %2562 = vmatprep.mubr.bf16.mxu0 0
      %2563 = vmatmul.mubr.bf16.gmra.mrb[0].mxu0 %v2262
      %v2564 = vpop.f32.mrb[0].mxu0
      %v2565 = vadd.f32 %v2404, %v2564
      %v2566 = vpop.f32.mrb[0].mxu0
      %v2567 = vpop.f32.mrb[0].mxu0
      %v2568 = vadd.f32 %v2407, %v2567
      %v2569 = vpop.f32.mrb[0].mxu0
      %2570 = vmatprep.mubr.bf16.mxu0 0
      %2571 = vmatmul.mubr.bf16.gmra.mrb[0].mxu0 %v2265
      %v2572 = vpop.f32.mrb[0].mxu0
      %v2573 = vadd.f32 %v2412, %v2572
      %v2574 = vpop.f32.mrb[0].mxu0
      %v2575 = vpop.f32.mrb[0].mxu0
      %v2576 = vadd.f32 %v2415, %v2575
      %v2577 = vpop.f32.mrb[0].mxu0
      %2578 = vmatprep.mubr.bf16.mxu0 0
      %2579 = vmatmul.mubr.bf16.gmra.mrb[0].mxu0 %v2268
      %v2580 = vpop.f32.mrb[0].mxu0
      %v2581 = vadd.f32 %v2420, %v2580
      %v2582 = vpop.f32.mrb[0].mxu0
      %v2583 = vpop.f32.mrb[0].mxu0
      %v2584 = vadd.f32 %v2423, %v2583
      %v2585 = vpop.f32.mrb[0].mxu0
      %2586 = vmatprep.mubr.bf16.mxu0 0
      %2587 = vmatmul.mubr.bf16.gmra.mrb[0].mxu0 %v2271
      %v2588 = vpop.f32.mrb[0].mxu0
      %v2589 = vadd.f32 %v2428, %v2588
      %v2590 = vpop.f32.mrb[0].mxu0
      %v2591 = vpop.f32.mrb[0].mxu0
      %v2592 = vadd.f32 %v2431, %v2591
      %v2593 = vpop.f32.mrb[0].mxu0
      %2594 = vdwg.mxu0
      %vm2595 = vcmask 64512
      %2596 = vst.msk [vmem:[%s278] sm:$0xff] %vm2595, %v2469
      %2597 = vst.msk [vmem:[%s278 + $0x8] sm:$0xff] %vm2595, %v2472
      %2598 = vst.msk [vmem:[%s278 + $0x10] sm:$0xff] %vm2595, %v2477
      %2599 = vst.msk [vmem:[%s278 + $0x18] sm:$0xff] %vm2595, %v2480
      %2600 = vst.msk [vmem:[%s278 + $0x20] sm:$0xff] %vm2595, %v2485
      %2601 = vst.msk [vmem:[%s278 + $0x28] sm:$0xff] %vm2595, %v2488
      %2602 = vst.msk [vmem:[%s278 + $0x30] sm:$0xff] %vm2595, %v2493
      %2603 = vst.msk [vmem:[%s278 + $0x38] sm:$0xff] %vm2595, %v2496
      %2604 = vst.msk [vmem:[%s278 + $0x40] sm:$0xff] %vm2595, %v2501
      %2605 = vst.msk [vmem:[%s278 + $0x48] sm:$0xff] %vm2595, %v2504
      %2606 = vst.msk [vmem:[%s278 + $0x50] sm:$0xff] %vm2595, %v2509
      %2607 = vst.msk [vmem:[%s278 + $0x58] sm:$0xff] %vm2595, %v2512
      %2608 = vst.msk [vmem:[%s278 + $0x60] sm:$0xff] %vm2595, %v2517
      %2609 = vst.msk [vmem:[%s278 + $0x68] sm:$0xff] %vm2595, %v2520
      %2610 = vst.msk [vmem:[%s278 + $0x70] sm:$0xff] %vm2595, %v2525
      %2611 = vst.msk [vmem:[%s278 + $0x78] sm:$0xff] %vm2595, %v2528
      %2612 = vst.msk [vmem:[%s278 + $0x80] sm:$0xff] %vm2595, %v2533
      %2613 = vst.msk [vmem:[%s278 + $0x88] sm:$0xff] %vm2595, %v2536
      %2614 = vst.msk [vmem:[%s278 + $0x90] sm:$0xff] %vm2595, %v2541
      %2615 = vst.msk [vmem:[%s278 + $0x98] sm:$0xff] %vm2595, %v2544
      %2616 = vst.msk [vmem:[%s278 + $0xa0] sm:$0xff] %vm2595, %v2549
      %2617 = vst.msk [vmem:[%s278 + $0xa8] sm:$0xff] %vm2595, %v2552
      %2618 = vst.msk [vmem:[%s278 + $0xb0] sm:$0xff] %vm2595, %v2557
      %2619 = vst.msk [vmem:[%s278 + $0xb8] sm:$0xff] %vm2595, %v2560
      %2620 = vst.msk [vmem:[%s278 + $0xc0] sm:$0xff] %vm2595, %v2565
      %2621 = vst.msk [vmem:[%s278 + $0xc8] sm:$0xff] %vm2595, %v2568
      %2622 = vst.msk [vmem:[%s278 + $0xd0] sm:$0xff] %vm2595, %v2573
      %2623 = vst.msk [vmem:[%s278 + $0xd8] sm:$0xff] %vm2595, %v2576
      %2624 = vst.msk [vmem:[%s278 + $0xe0] sm:$0xff] %vm2595, %v2581
      %2625 = vst.msk [vmem:[%s278 + $0xe8] sm:$0xff] %vm2595, %v2584
      %2626 = vst.msk [vmem:[%s278 + $0xf0] sm:$0xff] %vm2595, %v2589
      %2627 = vst.msk [vmem:[%s278 + $0xf8] sm:$0xff] %vm2595, %v2592
      %p2628 = scmp.lt.s32.totalorder %s18, 1
      %s2629 = scalar_select %p2628, %s18, 1
      %s2630 = smul.addr %s2629, 32
      %s2631 = smul.addr %s2630, 8
      %s2632 = scalar_lea.vmem %s7, %s2631
      // Predicated region
      $region49: #{bottleneck_forward.1} parent=47 // pred_check
        %p2633 = pneg %p188
      $region50: #{bottleneck_forward.1} parent=47 // pred_check_branch
        %2635 = sbr.rel (%p2633) target = $region52
      $region51: #{bottleneck_forward.1} parent=47 // pred_region
        _
      $region52: #{bottleneck_forward.1} parent=47 // pred_fallthru
        _
    $region48: #{bottleneck_forward.1} parent=5 // pred_fallthru
      _
    %p2636 = scmp.le.s32.totalorder 2, %s13
    // Predicated region
    $region53: #{bottleneck_forward.1} parent=5 // pred_check
      %p2637 = pneg %p2636
    $region54: #{bottleneck_forward.1} parent=5 // pred_check_branch
      %2639 = sbr.rel (%p2637) target = $region56
    $region55: #{bottleneck_forward.1} parent=5 // pred_region
      %s2640 = ssub.s32 %s13, 2
      // Predicated region
      $region57: #{bottleneck_forward.1} parent=55 // pred_check
        %p2641 = pneg %p194
      $region58: #{bottleneck_forward.1} parent=55 // pred_check_branch
        %2643 = sbr.rel (%p2641) target = $region60
      $region59: #{bottleneck_forward.1} parent=55 // pred_region
        %p2644 = scmp.lt.s32.totalorder %s19, 1
        %s2645 = scalar_select %p2644, %s19, 1
        %s2646 = smul.addr %s2645, 32
        %s2647 = smul.addr %s2646, 8
        %s2648 = scalar_lea.vmem %s7, %s2647
      $region60: #{bottleneck_forward.1} parent=55 // pred_fallthru
        _
    $region56: #{bottleneck_forward.1} parent=5 // pred_fallthru
      _
  $region6: #{bottleneck_forward.1} parent=0 // loop_footer
    %s17 = sadd.s32 1, %s13
  $region7: #{bottleneck_forward.1} parent=0 // loop_footer_branch
    %12 = sbr.rel target = $region3
  $region8: #{bottleneck_forward.1} parent=0 // loop_exit
    _

</llo_original>
